<compile_context>
chip_gen: v6e
topology: v6e:2x2x1
jax: 0.10.0
libtpu: 0.0.40
codegen_flags: <defaults>
</compile_context>

<pallas_src>
import jax
import jax.numpy as jnp
from jax.experimental import pallas as pl
from jax.experimental.pallas import tpu as pltpu


def _moli_kernel(
    x1_ref, x2_ref, x3_ref,
    w1_ref, b1_ref,
    w2_ref, b2_ref,
    w3_ref, b3_ref,
    wc_ref, bc_ref,
    wo_ref, bo_ref,
    out_ref,
):
    # Branch 1..3: Linear (MXU, f32 accumulation) + bias + ReLU.
    # Biases are kept in f32 so the whole epilogue stays on the f32 VPU path.
    h1 = jnp.maximum(
        jnp.dot(x1_ref[...], w1_ref[...], preferred_element_type=jnp.float32)
        + b1_ref[...], 0.0)
    h2 = jnp.maximum(
        jnp.dot(x2_ref[...], w2_ref[...], preferred_element_type=jnp.float32)
        + b2_ref[...], 0.0)
    h3 = jnp.maximum(
        jnp.dot(x3_ref[...], w3_ref[...], preferred_element_type=jnp.float32)
        + b3_ref[...], 0.0)

    # Classifier layer 1: single lane-dense [B, 3H] @ [3H, H] MXU pass.
    # The concat happens along the lane axis entirely inside VMEM.
    h = jnp.concatenate([h1, h2, h3], axis=-1).astype(wc_ref.dtype)
    z = jnp.maximum(
        jnp.dot(h, wc_ref[...], preferred_element_type=jnp.float32)
        + bc_ref[...], 0.0)

    # Classifier layer 2 (output_dim == 1): an N=1 MXU matmul is <1% utilized,
    # so compute it as a VPU elementwise multiply + XLU lane-reduce instead.
    logits = jnp.sum(z * wo_ref[...], axis=-1, keepdims=True) + bo_ref[...]
    out_ref[...] = jax.nn.sigmoid(logits)


def _round_up(n, m):
    return ((n + m - 1) // m) * m


def _pad_rows(x, n_rows):
    if x.shape[0] == n_rows:
        return x
    return jnp.pad(x, ((0, n_rows - x.shape[0]), (0, 0)))


def moli_forward(x1, x2, x3, params, *, tile_b=128, compute_dtype=jnp.bfloat16):
    """Fused MOLI forward pass, batch-tiled with weights resident in VMEM."""
    B = x1.shape[0]
    assert x2.shape[0] == B and x3.shape[0] == B
    d1, d2, d3 = x1.shape[1], x2.shape[1], x3.shape[1]
    hidden = params["w1"].shape[1]
    out_dim = params["bo"].shape[-1]
    assert out_dim == 1, "kernel specializes the output_dim=1 case of MOLI"

    # Batch tiling: tile must be a multiple of 8 (sublane); pad batch to fit.
    tile_b = max(8, min(tile_b, _round_up(B, 8)))
    b_pad = _round_up(B, tile_b)
    grid = (b_pad // tile_b,)

    cd = compute_dtype
    x1p = _pad_rows(x1, b_pad).astype(cd)
    x2p = _pad_rows(x2, b_pad).astype(cd)
    x3p = _pad_rows(x3, b_pad).astype(cd)

    # Matmul operands in compute dtype; biases / final-row weight stay f32
    # (epilogue runs in the f32 accumulator dtype, cast only at the store).
    w1 = params["w1"].astype(cd)
    w2 = params["w2"].astype(cd)
    w3 = params["w3"].astype(cd)
    wc = params["wc"].astype(cd)
    b1 = params["b1"].astype(jnp.float32)
    b2 = params["b2"].astype(jnp.float32)
    b3 = params["b3"].astype(jnp.float32)
    bc = params["bc"].astype(jnp.float32)
    wo = params["wo"].astype(jnp.float32)   # [1, H] row
    bo = params["bo"].astype(jnp.float32)   # [1, 1]

    def stream(d):      # activation tiles: new block each grid step
        return pl.BlockSpec((tile_b, d), lambda i: (i, 0))

    def resident(shape):  # weights/biases: same block every step -> DMA'd once
        return pl.BlockSpec(shape, lambda i: (0, 0))

    in_specs = [
        stream(d1), stream(d2), stream(d3),
        resident((d1, hidden)), resident((1, hidden)),
        resident((d2, hidden)), resident((1, hidden)),
        resident((d3, hidden)), resident((1, hidden)),
        resident((3 * hidden, hidden)), resident((1, hidden)),
        resident((1, hidden)), resident((1, 1)),
    ]

    out = pl.pallas_call(
        _moli_kernel,
        out_shape=jax.ShapeDtypeStruct((b_pad, 1), jnp.float32),
        grid=grid,
        in_specs=in_specs,
        out_specs=pl.BlockSpec((tile_b, 1), lambda i: (i, 0)),
        compiler_params=pltpu.CompilerParams(
            dimension_semantics=("parallel",)),
    )(x1p, x2p, x3p, w1, b1, w2, b2, w3, b3, wc, bc, wo, bo)

    return out[:B]


def init_params(key, input_dims, hidden_dim=64, output_dim=1):
    """Deterministic synthetic params, PyTorch-Linear-like uniform init."""
    def linear(k, fan_in, fan_out):
        kw, kb = jax.random.split(k)
        bound = 1.0 / jnp.sqrt(fan_in)
        w = jax.random.uniform(kw, (fan_in, fan_out), jnp.float32, -bound, bound)
        b = jax.random.uniform(kb, (1, fan_out), jnp.float32, -bound, bound)
        return w, b

    keys = jax.random.split(key, 5)
    w1, b1 = linear(keys[0], input_dims[0], hidden_dim)
    w2, b2 = linear(keys[1], input_dims[1], hidden_dim)
    w3, b3 = linear(keys[2], input_dims[2], hidden_dim)
    wc, bc = linear(keys[3], 3 * hidden_dim, hidden_dim)
    wo, bo = linear(keys[4], hidden_dim, output_dim)

    return {
        "w1": w1, "b1": b1,
        "w2": w2, "b2": b2,
        "w3": w3, "b3": b3,
        "wc": wc, "bc": bc,          # full [3H, H] classifier weight (un-split)
        "wo": wo.T,                  # stored as [1, H] row for the lane reduce
        "bo": bo,                    # [1, 1]
    }


def moli_reference(x1, x2, x3, params):
    """Pure-JAX f32 reference for correctness checking."""
    h1 = jnp.maximum(x1 @ params["w1"] + params["b1"], 0.0)
    h2 = jnp.maximum(x2 @ params["w2"] + params["b2"], 0.0)
    h3 = jnp.maximum(x3 @ params["w3"] + params["b3"], 0.0)
    combined = jnp.concatenate([h1, h2, h3], axis=1)
    z = jnp.maximum(combined @ params["wc"] + params["bc"], 0.0)
    return jax.nn.sigmoid(z @ params["wo"].T + params["bo"])


if __name__ == "__main__":
    key = jax.random.PRNGKey(0)
    k_p, k1, k2, k3 = jax.random.split(key, 4)

    # small shapes consistent with MOLI's forward (batch tiled 2x128)
    batch = 256
    input_dims = [16, 24, 32]
    hidden_dim = 64
    output_dim = 1

    params = init_params(k_p, input_dims, hidden_dim, output_dim)

    x1 = jax.random.normal(k1, (batch, input_dims[0]), jnp.float32)
    x2 = jax.random.normal(k2, (batch, input_dims[1]), jnp.float32)
    x3 = jax.random.normal(k3, (batch, input_dims[2]), jnp.float32)

    ref = moli_reference(x1, x2, x3, params)

    # Strict correctness check: f32 compute path.
    out_f32 = jax.block_until_ready(
        moli_forward(x1, x2, x3, params, tile_b=128, compute_dtype=jnp.float32))
    assert out_f32.shape == (batch, output_dim)
    assert jnp.allclose(out_f32, ref, atol=1e-5, rtol=1e-5), "f32 mismatch vs reference"

    # Production path: bf16 operands, f32 MXU accumulation.
    out_bf16 = jax.block_until_ready(
        moli_forward(x1, x2, x3, params, tile_b=128, compute_dtype=jnp.bfloat16))
    assert out_bf16.shape == (batch, output_dim)
    assert jnp.allclose(out_bf16, ref, atol=2e-2, rtol=2e-2), "bf16 mismatch vs reference"

    print("KERNEL_OK")
</pallas_src>

<mosaic_0001>
module attributes {stable_mosaic.version = 11 : i64} {
  func.func @_moli_kernel(%arg0: i32, %arg1: memref<128x16xf32, #tpu.memory_space<vmem>>, %arg2: memref<128x24xf32, #tpu.memory_space<vmem>>, %arg3: memref<128x32xf32, #tpu.memory_space<vmem>>, %arg4: memref<16x64xf32, #tpu.memory_space<vmem>>, %arg5: memref<1x64xf32, #tpu.memory_space<vmem>>, %arg6: memref<24x64xf32, #tpu.memory_space<vmem>>, %arg7: memref<1x64xf32, #tpu.memory_space<vmem>>, %arg8: memref<32x64xf32, #tpu.memory_space<vmem>>, %arg9: memref<1x64xf32, #tpu.memory_space<vmem>>, %arg10: memref<192x64xf32, #tpu.memory_space<vmem>>, %arg11: memref<1x64xf32, #tpu.memory_space<vmem>>, %arg12: memref<1x64xf32, #tpu.memory_space<vmem>>, %arg13: memref<1x1xf32, #tpu.memory_space<vmem>>, %arg14: memref<128x1xf32, #tpu.memory_space<vmem>>) attributes {dimension_semantics = [#tpu.dimension_semantics<parallel>], iteration_bounds = array<i64: 2>, scalar_prefetch = 0 : i64, scratch_operands = 0 : i64, tpu.core_type = #tpu.core_type<tc>, window_params = [{transform_indices = @transform_0, window_bounds = array<i64: 128, 16>}, {transform_indices = @transform_1, window_bounds = array<i64: 128, 24>}, {transform_indices = @transform_2, window_bounds = array<i64: 128, 32>}, {pipeline_mode = #tpu.pipeline_mode<synchronous>, transform_indices = @transform_3, window_bounds = array<i64: 16, 64>}, {pipeline_mode = #tpu.pipeline_mode<synchronous>, transform_indices = @transform_4, window_bounds = array<i64: 1, 64>}, {pipeline_mode = #tpu.pipeline_mode<synchronous>, transform_indices = @transform_5, window_bounds = array<i64: 24, 64>}, {pipeline_mode = #tpu.pipeline_mode<synchronous>, transform_indices = @transform_6, window_bounds = array<i64: 1, 64>}, {pipeline_mode = #tpu.pipeline_mode<synchronous>, transform_indices = @transform_7, window_bounds = array<i64: 32, 64>}, {pipeline_mode = #tpu.pipeline_mode<synchronous>, transform_indices = @transform_8, window_bounds = array<i64: 1, 64>}, {pipeline_mode = #tpu.pipeline_mode<synchronous>, transform_indices = @transform_9, window_bounds = array<i64: 192, 64>}, {pipeline_mode = #tpu.pipeline_mode<synchronous>, transform_indices = @transform_10, window_bounds = array<i64: 1, 64>}, {pipeline_mode = #tpu.pipeline_mode<synchronous>, transform_indices = @transform_11, window_bounds = array<i64: 1, 64>}, {pipeline_mode = #tpu.pipeline_mode<synchronous>, transform_indices = @transform_12, window_bounds = array<i64: 1, 1>}, {transform_indices = @transform_13, window_bounds = array<i64: 128, 1>}]} {
    %c0 = arith.constant 0 : index
    %c0_0 = arith.constant 0 : index
    %0 = vector.load %arg1[%c0, %c0_0] : memref<128x16xf32, #tpu.memory_space<vmem>>, vector<128x16xf32>
    %c0_1 = arith.constant 0 : index
    %c0_2 = arith.constant 0 : index
    %1 = vector.load %arg4[%c0_1, %c0_2] : memref<16x64xf32, #tpu.memory_space<vmem>>, vector<16x64xf32>
    %cst = arith.constant dense<0.000000e+00> : vector<128x64xf32>
    %2 = tpu.matmul %0, %1, %cst {dimension_numbers = #tpu.dot_dimension_numbers<[1], [0], [0], [1], [0, 0, 1, 1], [], []>} : vector<128x16xf32>, vector<16x64xf32>, vector<128x64xf32> -> vector<128x64xf32>
    %c0_3 = arith.constant 0 : index
    %c0_4 = arith.constant 0 : index
    %3 = vector.load %arg5[%c0_3, %c0_4] : memref<1x64xf32, #tpu.memory_space<vmem>>, vector<1x64xf32>
    %4 = vector.broadcast %3 : vector<1x64xf32> to vector<128x64xf32>
    %5 = arith.addf %2, %4 : vector<128x64xf32>
    %cst_5 = arith.constant 0.000000e+00 : f32
    %6 = vector.broadcast %cst_5 : f32 to vector<128x64xf32>
    %7 = arith.maximumf %5, %6 : vector<128x64xf32>
    %c0_6 = arith.constant 0 : index
    %c0_7 = arith.constant 0 : index
    %8 = vector.load %arg2[%c0_6, %c0_7] : memref<128x24xf32, #tpu.memory_space<vmem>>, vector<128x24xf32>
    %c0_8 = arith.constant 0 : index
    %c0_9 = arith.constant 0 : index
    %9 = vector.load %arg6[%c0_8, %c0_9] : memref<24x64xf32, #tpu.memory_space<vmem>>, vector<24x64xf32>
    %cst_10 = arith.constant dense<0.000000e+00> : vector<128x64xf32>
    %10 = tpu.matmul %8, %9, %cst_10 {dimension_numbers = #tpu.dot_dimension_numbers<[1], [0], [0], [1], [0, 0, 1, 1], [], []>} : vector<128x24xf32>, vector<24x64xf32>, vector<128x64xf32> -> vector<128x64xf32>
    %c0_11 = arith.constant 0 : index
    %c0_12 = arith.constant 0 : index
    %11 = vector.load %arg7[%c0_11, %c0_12] : memref<1x64xf32, #tpu.memory_space<vmem>>, vector<1x64xf32>
    %12 = vector.broadcast %11 : vector<1x64xf32> to vector<128x64xf32>
    %13 = arith.addf %10, %12 : vector<128x64xf32>
    %cst_13 = arith.constant 0.000000e+00 : f32
    %14 = vector.broadcast %cst_13 : f32 to vector<128x64xf32>
    %15 = arith.maximumf %13, %14 : vector<128x64xf32>
    %c0_14 = arith.constant 0 : index
    %c0_15 = arith.constant 0 : index
    %16 = vector.load %arg3[%c0_14, %c0_15] : memref<128x32xf32, #tpu.memory_space<vmem>>, vector<128x32xf32>
    %c0_16 = arith.constant 0 : index
    %c0_17 = arith.constant 0 : index
    %17 = vector.load %arg8[%c0_16, %c0_17] : memref<32x64xf32, #tpu.memory_space<vmem>>, vector<32x64xf32>
    %cst_18 = arith.constant dense<0.000000e+00> : vector<128x64xf32>
    %18 = tpu.matmul %16, %17, %cst_18 {dimension_numbers = #tpu.dot_dimension_numbers<[1], [0], [0], [1], [0, 0, 1, 1], [], []>} : vector<128x32xf32>, vector<32x64xf32>, vector<128x64xf32> -> vector<128x64xf32>
    %c0_19 = arith.constant 0 : index
    %c0_20 = arith.constant 0 : index
    %19 = vector.load %arg9[%c0_19, %c0_20] : memref<1x64xf32, #tpu.memory_space<vmem>>, vector<1x64xf32>
    %20 = vector.broadcast %19 : vector<1x64xf32> to vector<128x64xf32>
    %21 = arith.addf %18, %20 : vector<128x64xf32>
    %cst_21 = arith.constant 0.000000e+00 : f32
    %22 = vector.broadcast %cst_21 : f32 to vector<128x64xf32>
    %23 = arith.maximumf %21, %22 : vector<128x64xf32>
    %24 = tpu.concatenate %7, %15, %23 in 1 : vector<128x64xf32>, vector<128x64xf32>, vector<128x64xf32> -> vector<128x192xf32>
    %c0_22 = arith.constant 0 : index
    %c0_23 = arith.constant 0 : index
    %25 = vector.load %arg10[%c0_22, %c0_23] : memref<192x64xf32, #tpu.memory_space<vmem>>, vector<192x64xf32>
    %cst_24 = arith.constant dense<0.000000e+00> : vector<128x64xf32>
    %26 = tpu.matmul %24, %25, %cst_24 {dimension_numbers = #tpu.dot_dimension_numbers<[1], [0], [0], [1], [0, 0, 1, 1], [], []>} : vector<128x192xf32>, vector<192x64xf32>, vector<128x64xf32> -> vector<128x64xf32>
    %c0_25 = arith.constant 0 : index
    %c0_26 = arith.constant 0 : index
    %27 = vector.load %arg11[%c0_25, %c0_26] : memref<1x64xf32, #tpu.memory_space<vmem>>, vector<1x64xf32>
    %28 = vector.broadcast %27 : vector<1x64xf32> to vector<128x64xf32>
    %29 = arith.addf %26, %28 : vector<128x64xf32>
    %cst_27 = arith.constant 0.000000e+00 : f32
    %30 = vector.broadcast %cst_27 : f32 to vector<128x64xf32>
    %31 = arith.maximumf %29, %30 : vector<128x64xf32>
    %c0_28 = arith.constant 0 : index
    %c0_29 = arith.constant 0 : index
    %32 = vector.load %arg12[%c0_28, %c0_29] : memref<1x64xf32, #tpu.memory_space<vmem>>, vector<1x64xf32>
    %33 = vector.broadcast %32 : vector<1x64xf32> to vector<128x64xf32>
    %34 = arith.mulf %31, %33 : vector<128x64xf32>
    %cst_30 = arith.constant dense<0.000000e+00> : vector<128xf32>
    %35 = vector.multi_reduction <add>, %34, %cst_30 [1] : vector<128x64xf32> to vector<128xf32>
    %36 = vector.shape_cast %35 : vector<128xf32> to vector<128x1xf32>
    %c0_31 = arith.constant 0 : index
    %c0_32 = arith.constant 0 : index
    %37 = vector.load %arg13[%c0_31, %c0_32] : memref<1x1xf32, #tpu.memory_space<vmem>>, vector<1x1xf32>
    %38 = vector.broadcast %37 : vector<1x1xf32> to vector<128x1xf32>
    %39 = arith.addf %36, %38 : vector<128x1xf32>
    %40 = arith.negf %39 : vector<128x1xf32>
    %41 = math.exp %40 : vector<128x1xf32>
    %cst_33 = arith.constant 1.000000e+00 : f32
    %42 = vector.broadcast %cst_33 : f32 to vector<128x1xf32>
    %43 = arith.addf %42, %41 : vector<128x1xf32>
    %44 = arith.divf %42, %43 : vector<128x1xf32>
    %c0_34 = arith.constant 0 : index
    %c0_35 = arith.constant 0 : index
    %45 = vector.load %arg14[%c0_34, %c0_35] : memref<128x1xf32, #tpu.memory_space<vmem>>, vector<128x1xf32>
    tpu.vector_store %arg14[%c0_34, %c0_35], %44 {strides = array<i32>} : memref<128x1xf32, #tpu.memory_space<vmem>>, vector<128x1xf32>,
    return
  }
  func.func @transform_0(%arg0: i32) -> (i32, i32) {
    %c0_i32 = arith.constant 0 : i32
    %c0_i32_0 = arith.constant 0 : i32
    return %arg0, %c0_i32 : i32, i32
  }
  func.func @transform_1(%arg0: i32) -> (i32, i32) {
    %c0_i32 = arith.constant 0 : i32
    %c0_i32_0 = arith.constant 0 : i32
    return %arg0, %c0_i32 : i32, i32
  }
  func.func @transform_2(%arg0: i32) -> (i32, i32) {
    %c0_i32 = arith.constant 0 : i32
    %c0_i32_0 = arith.constant 0 : i32
    return %arg0, %c0_i32 : i32, i32
  }
  func.func @transform_3(%arg0: i32) -> (i32, i32) {
    %c0_i32 = arith.constant 0 : i32
    %c0_i32_0 = arith.constant 0 : i32
    %c0_i32_1 = arith.constant 0 : i32
    return %c0_i32, %c0_i32_0 : i32, i32
  }
  func.func @transform_4(%arg0: i32) -> (i32, i32) {
    %c0_i32 = arith.constant 0 : i32
    %c0_i32_0 = arith.constant 0 : i32
    %c0_i32_1 = arith.constant 0 : i32
    return %c0_i32, %c0_i32_0 : i32, i32
  }
  func.func @transform_5(%arg0: i32) -> (i32, i32) {
    %c0_i32 = arith.constant 0 : i32
    %c0_i32_0 = arith.constant 0 : i32
    %c0_i32_1 = arith.constant 0 : i32
    return %c0_i32, %c0_i32_0 : i32, i32
  }
  func.func @transform_6(%arg0: i32) -> (i32, i32) {
    %c0_i32 = arith.constant 0 : i32
    %c0_i32_0 = arith.constant 0 : i32
    %c0_i32_1 = arith.constant 0 : i32
    return %c0_i32, %c0_i32_0 : i32, i32
  }
  func.func @transform_7(%arg0: i32) -> (i32, i32) {
    %c0_i32 = arith.constant 0 : i32
    %c0_i32_0 = arith.constant 0 : i32
    %c0_i32_1 = arith.constant 0 : i32
    return %c0_i32, %c0_i32_0 : i32, i32
  }
  func.func @transform_8(%arg0: i32) -> (i32, i32) {
    %c0_i32 = arith.constant 0 : i32
    %c0_i32_0 = arith.constant 0 : i32
    %c0_i32_1 = arith.constant 0 : i32
    return %c0_i32, %c0_i32_0 : i32, i32
  }
  func.func @transform_9(%arg0: i32) -> (i32, i32) {
    %c0_i32 = arith.constant 0 : i32
    %c0_i32_0 = arith.constant 0 : i32
    %c0_i32_1 = arith.constant 0 : i32
    return %c0_i32, %c0_i32_0 : i32, i32
  }
  func.func @transform_10(%arg0: i32) -> (i32, i32) {
    %c0_i32 = arith.constant 0 : i32
    %c0_i32_0 = arith.constant 0 : i32
    %c0_i32_1 = arith.constant 0 : i32
    return %c0_i32, %c0_i32_0 : i32, i32
  }
  func.func @transform_11(%arg0: i32) -> (i32, i32) {
    %c0_i32 = arith.constant 0 : i32
    %c0_i32_0 = arith.constant 0 : i32
    %c0_i32_1 = arith.constant 0 : i32
    return %c0_i32, %c0_i32_0 : i32, i32
  }
  func.func @transform_12(%arg0: i32) -> (i32, i32) {
    %c0_i32 = arith.constant 0 : i32
    %c0_i32_0 = arith.constant 0 : i32
    %c0_i32_1 = arith.constant 0 : i32
    return %c0_i32, %c0_i32_0 : i32, i32
  }
  func.func @transform_13(%arg0: i32) -> (i32, i32) {
    %c0_i32 = arith.constant 0 : i32
    %c0_i32_0 = arith.constant 0 : i32
    return %arg0, %c0_i32 : i32, i32
  }
}

</mosaic_0001>

<llo_original>
// kernel: tpu_custom_call.1
$region0: #{tpu_custom_call.1}
  #allocation0 [shape = 'u32[]', space=smem, size = 0x4, offset = 0x4, fixed_abs, tag = 'smem constant byte address 0x4 - core index']
  #allocation1 [shape = 'u32[144,128]{1,0:T(1,128)}', space=vmem, size = 0x12000, scoped, tag = 'internal scratch']
  #allocation2 [shape = 'f32[1,1]{1,0:T(1,128)S(1)}', space=vmem, size = 0x200, scoped, tag = 'scoped memory for tpu_custom_call.1']
  %s0 = inlined_call_operand.vmem [shape: f32[256,16], index: 0, kind: input, shape index: {}]
  %s1 = inlined_call_operand.vmem [shape: f32[256,24], index: 1, kind: input, shape index: {}]
  %s2 = inlined_call_operand.vmem [shape: f32[256,32], index: 2, kind: input, shape index: {}]
  %s3 = inlined_call_operand.vmem [shape: f32[16,64], index: 3, kind: input, shape index: {}]
  %s4 = inlined_call_operand.vmem [shape: f32[1,64], index: 4, kind: input, shape index: {}]
  %s5 = inlined_call_operand.vmem [shape: f32[24,64], index: 5, kind: input, shape index: {}]
  %s6 = inlined_call_operand.vmem [shape: f32[1,64], index: 6, kind: input, shape index: {}]
  %s7 = inlined_call_operand.vmem [shape: f32[32,64], index: 7, kind: input, shape index: {}]
  %s8 = inlined_call_operand.vmem [shape: f32[1,64], index: 8, kind: input, shape index: {}]
  %s9 = inlined_call_operand.vmem [shape: f32[192,64], index: 9, kind: input, shape index: {}]
  %s10 = inlined_call_operand.vmem [shape: f32[1,64], index: 10, kind: input, shape index: {}]
  %s11 = inlined_call_operand.vmem [shape: f32[1,64], index: 11, kind: input, shape index: {}]
  %s12 = inlined_call_operand.<no memory space> [shape: f32[1,1], index: 12, kind: input, shape index: {}]
  %s13 = inlined_call_operand.vmem [shape: f32[256,1], index: 13, kind: output, shape index: {}]
  %s14 = sld [smem:[#allocation0]]
  $region85: #{tpu_custom_call.1} parent=0
    _
  %s16 = ssub.s32 1, %s14
  %s17 = scalar_select 0, %s16, %s14
  %v18 = vstv %s12
  %19 = vst [vmem:[#allocation2] sm:$0x1] %v18
  loop: start=0, step=1, limit=4
  $region2: #{tpu_custom_call.1} parent=0 // loop_pre_header
    _
  $region3: #{tpu_custom_call.1} parent=0 // loop_header
    %s21 = sphi 0, %s25
    %p22 = scmp.ge.s32.totalorder %s21, 4
    %s31 = sphi 0, %s33
    %s34 = sphi 0, %s31
    %s35 = sphi 0, %s34
    %s51 = sphi 0, %s35
    %s57 = sphi 0, %s59
    %s60 = sphi 0, %s57
    %s61 = sphi 0, %s60
    %s77 = sphi 0, %s61
    %s83 = sphi 0, %s85
    %s86 = sphi 0, %s83
    %s87 = sphi 0, %s86
    %s103 = sphi 0, %s87
    %s107 = sphi 0, %s107
    %s109 = sphi 0, %s107
    %s110 = sphi 0, %s109
    %s124 = sphi 0, %s110
    %s128 = sphi 0, %s128
    %s130 = sphi 0, %s128
    %s131 = sphi 0, %s130
    %s145 = sphi 0, %s131
    %s149 = sphi 0, %s149
    %s151 = sphi 0, %s149
    %s152 = sphi 0, %s151
    %s166 = sphi 0, %s152
    %s170 = sphi 0, %s170
    %s172 = sphi 0, %s170
    %s173 = sphi 0, %s172
    %s187 = sphi 0, %s173
    %s191 = sphi 0, %s191
    %s193 = sphi 0, %s191
    %s194 = sphi 0, %s193
    %s208 = sphi 0, %s194
    %s212 = sphi 0, %s212
    %s214 = sphi 0, %s212
    %s215 = sphi 0, %s214
    %s229 = sphi 0, %s215
    %s233 = sphi 0, %s233
    %s235 = sphi 0, %s233
    %s236 = sphi 0, %s235
    %s250 = sphi 0, %s236
    %s254 = sphi 0, %s254
    %s256 = sphi 0, %s254
    %s257 = sphi 0, %s256
    %s271 = sphi 0, %s257
    %s275 = sphi 0, %s275
    %s277 = sphi 0, %s275
    %s278 = sphi 0, %s277
    %s292 = sphi 0, %s278
    %s296 = sphi 0, %s296
    %s298 = sphi 0, %s296
    %s299 = sphi 0, %s298
    %s313 = sphi 0, %s299
    %s319 = sphi 0, %s321
    %s322 = sphi 0, %s319
    %s323 = sphi 0, %s322
    %s339 = sphi 0, %s323
  $region4: #{tpu_custom_call.1} parent=0 // loop_header_branch
    %24 = sbr.rel (%p22) target = $region8
  $region5: #{tpu_custom_call.1} parent=0 // loop_body
    %s26 = ssub.s32 %s21, 1
    %s27 = ssub.s32 %s21, 2
    %s28 = sadd.s32 %s21, 1
    %s29 = ssub.s32 %s21, %s28
    %p30 = scmp.eq.s32.totalorder %s29, 0
    %s32 = sadd.s32 %s31, 1
    %s33 = scalar_select %p30, %s31, %s32
    %p36 = pneg %p30
    %p37 = scmp.eq.s32.totalorder %s21, 1
    %p38 = por %p36, %p37
    %p39 = scmp.ne.s32.totalorder %s31, %s34
    %p40 = scmp.eq.s32.totalorder %s21, 0
    %p41 = por %p39, %p40
    %p42 = scmp.ne.s32.totalorder %s31, %s34
    %p43 = scmp.eq.s32.totalorder %s26, 1
    %p44 = por %p42, %p43
    %p45 = scmp.ne.s32.totalorder %s34, %s35
    %p46 = scmp.eq.s32.totalorder %s26, 0
    %p47 = por %p45, %p46
    %p48 = scmp.ne.s32.totalorder %s34, %s35
    %p49 = scmp.eq.s32.totalorder %s27, 1
    %p50 = por %p48, %p49
    %p52 = scmp.ne.s32.totalorder %s35, %s51
    %p53 = scmp.eq.s32.totalorder %s27, 0
    %p54 = por %p52, %p53
    %s55 = ssub.s32 %s21, %s28
    %p56 = scmp.eq.s32.totalorder %s55, 0
    %s58 = sadd.s32 %s57, 1
    %s59 = scalar_select %p56, %s57, %s58
    %p62 = pneg %p56
    %p63 = scmp.eq.s32.totalorder %s21, 1
    %p64 = por %p62, %p63
    %p65 = scmp.ne.s32.totalorder %s57, %s60
    %p66 = scmp.eq.s32.totalorder %s21, 0
    %p67 = por %p65, %p66
    %p68 = scmp.ne.s32.totalorder %s57, %s60
    %p69 = scmp.eq.s32.totalorder %s26, 1
    %p70 = por %p68, %p69
    %p71 = scmp.ne.s32.totalorder %s60, %s61
    %p72 = scmp.eq.s32.totalorder %s26, 0
    %p73 = por %p71, %p72
    %p74 = scmp.ne.s32.totalorder %s60, %s61
    %p75 = scmp.eq.s32.totalorder %s27, 1
    %p76 = por %p74, %p75
    %p78 = scmp.ne.s32.totalorder %s61, %s77
    %p79 = scmp.eq.s32.totalorder %s27, 0
    %p80 = por %p78, %p79
    %s81 = ssub.s32 %s21, %s28
    %p82 = scmp.eq.s32.totalorder %s81, 0
    %s84 = sadd.s32 %s83, 1
    %s85 = scalar_select %p82, %s83, %s84
    %p88 = pneg %p82
    %p89 = scmp.eq.s32.totalorder %s21, 1
    %p90 = por %p88, %p89
    %p91 = scmp.ne.s32.totalorder %s83, %s86
    %p92 = scmp.eq.s32.totalorder %s21, 0
    %p93 = por %p91, %p92
    %p94 = scmp.ne.s32.totalorder %s83, %s86
    %p95 = scmp.eq.s32.totalorder %s26, 1
    %p96 = por %p94, %p95
    %p97 = scmp.ne.s32.totalorder %s86, %s87
    %p98 = scmp.eq.s32.totalorder %s26, 0
    %p99 = por %p97, %p98
    %p100 = scmp.ne.s32.totalorder %s86, %s87
    %p101 = scmp.eq.s32.totalorder %s27, 1
    %p102 = por %p100, %p101
    %p104 = scmp.ne.s32.totalorder %s87, %s103
    %p105 = scmp.eq.s32.totalorder %s27, 0
    %p106 = por %p104, %p105
    %s108 = sadd.s32 %s107, 1
    %p111 = scmp.eq.s32.totalorder %s21, 1
    %p112 = scmp.ne.s32.totalorder %s107, %s109
    %p113 = scmp.eq.s32.totalorder %s21, 0
    %p114 = por %p112, %p113
    %p115 = scmp.ne.s32.totalorder %s107, %s109
    %p116 = scmp.eq.s32.totalorder %s26, 1
    %p117 = por %p115, %p116
    %p118 = scmp.ne.s32.totalorder %s109, %s110
    %p119 = scmp.eq.s32.totalorder %s26, 0
    %p120 = por %p118, %p119
    %p121 = scmp.ne.s32.totalorder %s109, %s110
    %p122 = scmp.eq.s32.totalorder %s27, 1
    %p123 = por %p121, %p122
    %p125 = scmp.ne.s32.totalorder %s110, %s124
    %p126 = scmp.eq.s32.totalorder %s27, 0
    %p127 = por %p125, %p126
    %s129 = sadd.s32 %s128, 1
    %p132 = scmp.eq.s32.totalorder %s21, 1
    %p133 = scmp.ne.s32.totalorder %s128, %s130
    %p134 = scmp.eq.s32.totalorder %s21, 0
    %p135 = por %p133, %p134
    %p136 = scmp.ne.s32.totalorder %s128, %s130
    %p137 = scmp.eq.s32.totalorder %s26, 1
    %p138 = por %p136, %p137
    %p139 = scmp.ne.s32.totalorder %s130, %s131
    %p140 = scmp.eq.s32.totalorder %s26, 0
    %p141 = por %p139, %p140
    %p142 = scmp.ne.s32.totalorder %s130, %s131
    %p143 = scmp.eq.s32.totalorder %s27, 1
    %p144 = por %p142, %p143
    %p146 = scmp.ne.s32.totalorder %s131, %s145
    %p147 = scmp.eq.s32.totalorder %s27, 0
    %p148 = por %p146, %p147
    %s150 = sadd.s32 %s149, 1
    %p153 = scmp.eq.s32.totalorder %s21, 1
    %p154 = scmp.ne.s32.totalorder %s149, %s151
    %p155 = scmp.eq.s32.totalorder %s21, 0
    %p156 = por %p154, %p155
    %p157 = scmp.ne.s32.totalorder %s149, %s151
    %p158 = scmp.eq.s32.totalorder %s26, 1
    %p159 = por %p157, %p158
    %p160 = scmp.ne.s32.totalorder %s151, %s152
    %p161 = scmp.eq.s32.totalorder %s26, 0
    %p162 = por %p160, %p161
    %p163 = scmp.ne.s32.totalorder %s151, %s152
    %p164 = scmp.eq.s32.totalorder %s27, 1
    %p165 = por %p163, %p164
    %p167 = scmp.ne.s32.totalorder %s152, %s166
    %p168 = scmp.eq.s32.totalorder %s27, 0
    %p169 = por %p167, %p168
    %s171 = sadd.s32 %s170, 1
    %p174 = scmp.eq.s32.totalorder %s21, 1
    %p175 = scmp.ne.s32.totalorder %s170, %s172
    %p176 = scmp.eq.s32.totalorder %s21, 0
    %p177 = por %p175, %p176
    %p178 = scmp.ne.s32.totalorder %s170, %s172
    %p179 = scmp.eq.s32.totalorder %s26, 1
    %p180 = por %p178, %p179
    %p181 = scmp.ne.s32.totalorder %s172, %s173
    %p182 = scmp.eq.s32.totalorder %s26, 0
    %p183 = por %p181, %p182
    %p184 = scmp.ne.s32.totalorder %s172, %s173
    %p185 = scmp.eq.s32.totalorder %s27, 1
    %p186 = por %p184, %p185
    %p188 = scmp.ne.s32.totalorder %s173, %s187
    %p189 = scmp.eq.s32.totalorder %s27, 0
    %p190 = por %p188, %p189
    %s192 = sadd.s32 %s191, 1
    %p195 = scmp.eq.s32.totalorder %s21, 1
    %p196 = scmp.ne.s32.totalorder %s191, %s193
    %p197 = scmp.eq.s32.totalorder %s21, 0
    %p198 = por %p196, %p197
    %p199 = scmp.ne.s32.totalorder %s191, %s193
    %p200 = scmp.eq.s32.totalorder %s26, 1
    %p201 = por %p199, %p200
    %p202 = scmp.ne.s32.totalorder %s193, %s194
    %p203 = scmp.eq.s32.totalorder %s26, 0
    %p204 = por %p202, %p203
    %p205 = scmp.ne.s32.totalorder %s193, %s194
    %p206 = scmp.eq.s32.totalorder %s27, 1
    %p207 = por %p205, %p206
    %p209 = scmp.ne.s32.totalorder %s194, %s208
    %p210 = scmp.eq.s32.totalorder %s27, 0
    %p211 = por %p209, %p210
    %s213 = sadd.s32 %s212, 1
    %p216 = scmp.eq.s32.totalorder %s21, 1
    %p217 = scmp.ne.s32.totalorder %s212, %s214
    %p218 = scmp.eq.s32.totalorder %s21, 0
    %p219 = por %p217, %p218
    %p220 = scmp.ne.s32.totalorder %s212, %s214
    %p221 = scmp.eq.s32.totalorder %s26, 1
    %p222 = por %p220, %p221
    %p223 = scmp.ne.s32.totalorder %s214, %s215
    %p224 = scmp.eq.s32.totalorder %s26, 0
    %p225 = por %p223, %p224
    %p226 = scmp.ne.s32.totalorder %s214, %s215
    %p227 = scmp.eq.s32.totalorder %s27, 1
    %p228 = por %p226, %p227
    %p230 = scmp.ne.s32.totalorder %s215, %s229
    %p231 = scmp.eq.s32.totalorder %s27, 0
    %p232 = por %p230, %p231
    %s234 = sadd.s32 %s233, 1
    %p237 = scmp.eq.s32.totalorder %s21, 1
    %p238 = scmp.ne.s32.totalorder %s233, %s235
    %p239 = scmp.eq.s32.totalorder %s21, 0
    %p240 = por %p238, %p239
    %p241 = scmp.ne.s32.totalorder %s233, %s235
    %p242 = scmp.eq.s32.totalorder %s26, 1
    %p243 = por %p241, %p242
    %p244 = scmp.ne.s32.totalorder %s235, %s236
    %p245 = scmp.eq.s32.totalorder %s26, 0
    %p246 = por %p244, %p245
    %p247 = scmp.ne.s32.totalorder %s235, %s236
    %p248 = scmp.eq.s32.totalorder %s27, 1
    %p249 = por %p247, %p248
    %p251 = scmp.ne.s32.totalorder %s236, %s250
    %p252 = scmp.eq.s32.totalorder %s27, 0
    %p253 = por %p251, %p252
    %s255 = sadd.s32 %s254, 1
    %p258 = scmp.eq.s32.totalorder %s21, 1
    %p259 = scmp.ne.s32.totalorder %s254, %s256
    %p260 = scmp.eq.s32.totalorder %s21, 0
    %p261 = por %p259, %p260
    %p262 = scmp.ne.s32.totalorder %s254, %s256
    %p263 = scmp.eq.s32.totalorder %s26, 1
    %p264 = por %p262, %p263
    %p265 = scmp.ne.s32.totalorder %s256, %s257
    %p266 = scmp.eq.s32.totalorder %s26, 0
    %p267 = por %p265, %p266
    %p268 = scmp.ne.s32.totalorder %s256, %s257
    %p269 = scmp.eq.s32.totalorder %s27, 1
    %p270 = por %p268, %p269
    %p272 = scmp.ne.s32.totalorder %s257, %s271
    %p273 = scmp.eq.s32.totalorder %s27, 0
    %p274 = por %p272, %p273
    %s276 = sadd.s32 %s275, 1
    %p279 = scmp.eq.s32.totalorder %s21, 1
    %p280 = scmp.ne.s32.totalorder %s275, %s277
    %p281 = scmp.eq.s32.totalorder %s21, 0
    %p282 = por %p280, %p281
    %p283 = scmp.ne.s32.totalorder %s275, %s277
    %p284 = scmp.eq.s32.totalorder %s26, 1
    %p285 = por %p283, %p284
    %p286 = scmp.ne.s32.totalorder %s277, %s278
    %p287 = scmp.eq.s32.totalorder %s26, 0
    %p288 = por %p286, %p287
    %p289 = scmp.ne.s32.totalorder %s277, %s278
    %p290 = scmp.eq.s32.totalorder %s27, 1
    %p291 = por %p289, %p290
    %p293 = scmp.ne.s32.totalorder %s278, %s292
    %p294 = scmp.eq.s32.totalorder %s27, 0
    %p295 = por %p293, %p294
    %s297 = sadd.s32 %s296, 1
    %p300 = scmp.eq.s32.totalorder %s21, 1
    %p301 = scmp.ne.s32.totalorder %s296, %s298
    %p302 = scmp.eq.s32.totalorder %s21, 0
    %p303 = por %p301, %p302
    %p304 = scmp.ne.s32.totalorder %s296, %s298
    %p305 = scmp.eq.s32.totalorder %s26, 1
    %p306 = por %p304, %p305
    %p307 = scmp.ne.s32.totalorder %s298, %s299
    %p308 = scmp.eq.s32.totalorder %s26, 0
    %p309 = por %p307, %p308
    %p310 = scmp.ne.s32.totalorder %s298, %s299
    %p311 = scmp.eq.s32.totalorder %s27, 1
    %p312 = por %p310, %p311
    %p314 = scmp.ne.s32.totalorder %s299, %s313
    %p315 = scmp.eq.s32.totalorder %s27, 0
    %p316 = por %p314, %p315
    %s317 = ssub.s32 %s21, %s28
    %p318 = scmp.eq.s32.totalorder %s317, 0
    %s320 = sadd.s32 %s319, 1
    %s321 = scalar_select %p318, %s319, %s320
    %p324 = pneg %p318
    %p325 = scmp.eq.s32.totalorder %s21, 1
    %p326 = por %p324, %p325
    %p327 = scmp.ne.s32.totalorder %s319, %s322
    %p328 = scmp.eq.s32.totalorder %s21, 0
    %p329 = por %p327, %p328
    %p330 = scmp.ne.s32.totalorder %s319, %s322
    %p331 = scmp.eq.s32.totalorder %s26, 1
    %p332 = por %p330, %p331
    %p333 = scmp.ne.s32.totalorder %s322, %s323
    %p334 = scmp.eq.s32.totalorder %s26, 0
    %p335 = por %p333, %p334
    %p336 = scmp.ne.s32.totalorder %s322, %s323
    %p337 = scmp.eq.s32.totalorder %s27, 1
    %p338 = por %p336, %p337
    %p340 = scmp.ne.s32.totalorder %s323, %s339
    %p341 = scmp.eq.s32.totalorder %s27, 0
    %p342 = por %p340, %p341
    %p343 = scmp.le.s32.totalorder 1, %s21
    %p344 = scmp.lt.s32.totalorder %s21, 3
    %p345 = pnand %p343, %p344
    %p346 = pneg %p345
    // Predicated region
    $region9: #{tpu_custom_call.1} parent=5 // pred_check
      _
    $region10: #{tpu_custom_call.1} parent=5 // pred_check_branch
      %348 = sbr.rel (%p345) target = $region12
    $region11: #{tpu_custom_call.1} parent=5 // pred_region
      %s349 = ssub.s32 %s21, 1
      // Predicated region
      $region13: #{tpu_custom_call.1} parent=11 // pred_check
        %p350 = pneg %p120
      $region14: #{tpu_custom_call.1} parent=11 // pred_check_branch
        %352 = sbr.rel (%p350) target = $region16
      $region15: #{tpu_custom_call.1} parent=11 // pred_region
        _
      $region16: #{tpu_custom_call.1} parent=11 // pred_fallthru
        _
      // Predicated region
      $region17: #{tpu_custom_call.1} parent=11 // pred_check
        %p353 = pneg %p141
      $region18: #{tpu_custom_call.1} parent=11 // pred_check_branch
        %355 = sbr.rel (%p353) target = $region20
      $region19: #{tpu_custom_call.1} parent=11 // pred_region
        _
      $region20: #{tpu_custom_call.1} parent=11 // pred_fallthru
        _
      // Predicated region
      $region21: #{tpu_custom_call.1} parent=11 // pred_check
        %p356 = pneg %p162
      $region22: #{tpu_custom_call.1} parent=11 // pred_check_branch
        %358 = sbr.rel (%p356) target = $region24
      $region23: #{tpu_custom_call.1} parent=11 // pred_region
        _
      $region24: #{tpu_custom_call.1} parent=11 // pred_fallthru
        _
      // Predicated region
      $region25: #{tpu_custom_call.1} parent=11 // pred_check
        %p359 = pneg %p183
      $region26: #{tpu_custom_call.1} parent=11 // pred_check_branch
        %361 = sbr.rel (%p359) target = $region28
      $region27: #{tpu_custom_call.1} parent=11 // pred_region
        _
      $region28: #{tpu_custom_call.1} parent=11 // pred_fallthru
        _
      // Predicated region
      $region29: #{tpu_custom_call.1} parent=11 // pred_check
        %p362 = pneg %p204
      $region30: #{tpu_custom_call.1} parent=11 // pred_check_branch
        %364 = sbr.rel (%p362) target = $region32
      $region31: #{tpu_custom_call.1} parent=11 // pred_region
        _
      $region32: #{tpu_custom_call.1} parent=11 // pred_fallthru
        _
      // Predicated region
      $region33: #{tpu_custom_call.1} parent=11 // pred_check
        %p365 = pneg %p225
      $region34: #{tpu_custom_call.1} parent=11 // pred_check_branch
        %367 = sbr.rel (%p365) target = $region36
      $region35: #{tpu_custom_call.1} parent=11 // pred_region
        _
      $region36: #{tpu_custom_call.1} parent=11 // pred_fallthru
        _
      // Predicated region
      $region37: #{tpu_custom_call.1} parent=11 // pred_check
        %p368 = pneg %p246
      $region38: #{tpu_custom_call.1} parent=11 // pred_check_branch
        %370 = sbr.rel (%p368) target = $region40
      $region39: #{tpu_custom_call.1} parent=11 // pred_region
        _
      $region40: #{tpu_custom_call.1} parent=11 // pred_fallthru
        _
      // Predicated region
      $region41: #{tpu_custom_call.1} parent=11 // pred_check
        %p371 = pneg %p267
      $region42: #{tpu_custom_call.1} parent=11 // pred_check_branch
        %373 = sbr.rel (%p371) target = $region44
      $region43: #{tpu_custom_call.1} parent=11 // pred_region
        _
      $region44: #{tpu_custom_call.1} parent=11 // pred_fallthru
        _
      // Predicated region
      $region45: #{tpu_custom_call.1} parent=11 // pred_check
        %p374 = pneg %p288
      $region46: #{tpu_custom_call.1} parent=11 // pred_check_branch
        %376 = sbr.rel (%p374) target = $region48
      $region47: #{tpu_custom_call.1} parent=11 // pred_region
        _
      $region48: #{tpu_custom_call.1} parent=11 // pred_fallthru
        _
      // Predicated region
      $region49: #{tpu_custom_call.1} parent=11 // pred_check
        %p377 = pneg %p309
      $region50: #{tpu_custom_call.1} parent=11 // pred_check_branch
        %379 = sbr.rel (%p377) target = $region52
      $region51: #{tpu_custom_call.1} parent=11 // pred_region
        _
      $region52: #{tpu_custom_call.1} parent=11 // pred_fallthru
        _
    $region12: #{tpu_custom_call.1} parent=5 // pred_fallthru
      _
    %p380 = scmp.lt.s32.totalorder %s21, 2
    // Predicated region
    $region53: #{tpu_custom_call.1} parent=5 // pred_check
      %p381 = pneg %p380
    $region54: #{tpu_custom_call.1} parent=5 // pred_check_branch
      %383 = sbr.rel (%p381) target = $region56
    $region55: #{tpu_custom_call.1} parent=5 // pred_region
      // Predicated region
      $region57: #{tpu_custom_call.1} parent=55 // pred_check
        %p384 = pneg %p41
      $region58: #{tpu_custom_call.1} parent=55 // pred_check_branch
        %386 = sbr.rel (%p384) target = $region60
      $region59: #{tpu_custom_call.1} parent=55 // pred_region
        %s387 = smul.u32 16, %s21
        %p388 = scmp.lt.s32.totalorder %s387, 31
        %s389 = scalar_select %p388, %s387, 31
        %s390 = smul.addr %s389, 8
        %s391 = scalar_lea.vmem %s0, %s390
        %s392 = smul.u32 16, %s21
      $region60: #{tpu_custom_call.1} parent=55 // pred_fallthru
        _
      // Predicated region
      $region61: #{tpu_custom_call.1} parent=55 // pred_check
        %p393 = pneg %p67
      $region62: #{tpu_custom_call.1} parent=55 // pred_check_branch
        %395 = sbr.rel (%p393) target = $region64
      $region63: #{tpu_custom_call.1} parent=55 // pred_region
        %s396 = smul.u32 16, %s21
        %p397 = scmp.lt.s32.totalorder %s396, 31
        %s398 = scalar_select %p397, %s396, 31
        %s399 = smul.addr %s398, 8
        %s400 = scalar_lea.vmem %s1, %s399
        %s401 = smul.u32 16, %s21
      $region64: #{tpu_custom_call.1} parent=55 // pred_fallthru
        _
      // Predicated region
      $region65: #{tpu_custom_call.1} parent=55 // pred_check
        %p402 = pneg %p93
      $region66: #{tpu_custom_call.1} parent=55 // pred_check_branch
        %404 = sbr.rel (%p402) target = $region68
      $region67: #{tpu_custom_call.1} parent=55 // pred_region
        %s405 = smul.u32 16, %s21
        %p406 = scmp.lt.s32.totalorder %s405, 31
        %s407 = scalar_select %p406, %s405, 31
        %s408 = smul.addr %s407, 8
        %s409 = scalar_lea.vmem %s2, %s408
        %s410 = smul.u32 16, %s21
      $region68: #{tpu_custom_call.1} parent=55 // pred_fallthru
        _
    $region56: #{tpu_custom_call.1} parent=5 // pred_fallthru
      _
    %p411 = scmp.le.s32.totalorder 1, %s21
    %p412 = scmp.lt.s32.totalorder %s21, 3
    %p413 = pnand %p411, %p412
    %p414 = pneg %p413
    // Predicated region
    $region69: #{tpu_custom_call.1} parent=5 // pred_check
      _
    $region70: #{tpu_custom_call.1} parent=5 // pred_check_branch
      %416 = sbr.rel (%p413) target = $region72
    $region71: #{tpu_custom_call.1} parent=5 // pred_region
      %s417 = ssub.s32 %s21, 1
      %s418 = smul.u32 16, %s26
      %p419 = scmp.lt.s32.totalorder %s418, 31
      %s420 = scalar_select %p419, %s418, 31
      %s421 = smul.addr %s420, 8
      %s422 = scalar_lea.vmem %s0, %s421
      %p423 = pneg %p47
      %p424 = pneg %p44
      %s425 = smul.u32 16, %s26
      %p426 = scmp.lt.s32.totalorder %s425, 31
      %s427 = scalar_select %p426, %s425, 31
      %s428 = smul.addr %s427, 8
      %s429 = scalar_lea.vmem %s1, %s428
      %p430 = pneg %p73
      %p431 = pneg %p70
      %s432 = smul.u32 16, %s26
      %p433 = scmp.lt.s32.totalorder %s432, 31
      %s434 = scalar_select %p433, %s432, 31
      %s435 = smul.addr %s434, 8
      %s436 = scalar_lea.vmem %s2, %s435
      %p437 = pneg %p99
      %p438 = pneg %p96
      %p439 = pneg %p120
      %p440 = pneg %p117
      %p441 = pneg %p141
      %p442 = pneg %p138
      %p443 = pneg %p162
      %p444 = pneg %p159
      %p445 = pneg %p183
      %p446 = pneg %p180
      %p447 = pneg %p204
      %p448 = pneg %p201
      %p449 = pneg %p225
      %p450 = pneg %p222
      %p451 = pneg %p246
      %p452 = pneg %p243
      %p453 = pneg %p267
      %p454 = pneg %p264
      %p455 = pneg %p288
      %p456 = pneg %p285
      %p457 = pneg %p309
      %p458 = pneg %p306
      %p459 = pneg %p335
      %p460 = pneg %p332
      %s461 = smul.u32 16, %s26
      %p462 = scmp.lt.s32.totalorder %s461, 31
      %s463 = scalar_select %p462, %s461, 31
      %s464 = smul.addr %s463, 8
      %s465 = scalar_lea.vmem %s13, %s464
      %s466 = smul.u32 16, %s26
      %p467 = scmp.lt.s32.totalorder %s466, 31
      %s468 = scalar_select %p467, %s466, 31
      %s469 = smul.addr %s468, 8
      %s470 = scalar_lea.vmem %s0, %s469
      %s471 = smul.u32 16, %s26
      %s472 = smul.u32 16, %s26
      %p473 = scmp.lt.s32.totalorder %s472, 31
      %s474 = scalar_select %p473, %s472, 31
      %s475 = smul.addr %s474, 8
      %s476 = scalar_lea.vmem %s1, %s475
      %s477 = smul.u32 16, %s26
      %s478 = smul.u32 16, %s26
      %p479 = scmp.lt.s32.totalorder %s478, 31
      %s480 = scalar_select %p479, %s478, 31
      %s481 = smul.addr %s480, 8
      %s482 = scalar_lea.vmem %s2, %s481
      %s483 = smul.u32 16, %s26
      %s484 = smul.u32 16, %s26
      %p485 = scmp.lt.s32.totalorder %s484, 31
      %s486 = scalar_select %p485, %s484, 31
      %s487 = smul.addr %s486, 8
      %s488 = scalar_lea.vmem %s13, %s487
      %s489 = smul.u32 16, %s26
      %v490 = vld [vmem:[%s470] sm:$0xff]
      %v491 = vld [vmem:[%s470 + $0x8] sm:$0xff]
      %v492 = vld [vmem:[%s470 + $0x10] sm:$0xff]
      %v493 = vld [vmem:[%s470 + $0x18] sm:$0xff]
      %v494 = vld [vmem:[%s470 + $0x20] sm:$0xff]
      %v495 = vld [vmem:[%s470 + $0x28] sm:$0xff]
      %v496 = vld [vmem:[%s470 + $0x30] sm:$0xff]
      %v497 = vld [vmem:[%s470 + $0x38] sm:$0xff]
      %v498 = vld [vmem:[%s470 + $0x40] sm:$0xff]
      %v499 = vld [vmem:[%s470 + $0x48] sm:$0xff]
      %v500 = vld [vmem:[%s470 + $0x50] sm:$0xff]
      %v501 = vld [vmem:[%s470 + $0x58] sm:$0xff]
      %v502 = vld [vmem:[%s470 + $0x60] sm:$0xff]
      %v503 = vld [vmem:[%s470 + $0x68] sm:$0xff]
      %v504 = vld [vmem:[%s470 + $0x70] sm:$0xff]
      %v505 = vld [vmem:[%s470 + $0x78] sm:$0xff]
      %v506 = vld [vmem:[%s3] sm:$0xff]
      %v507 = vld [vmem:[%s3 + $0x8] sm:$0xff]
      %v508 = vld [vmem:[%s4] sm:$0x1]
      %v510 = vlaneseq
      %v511 = vshrl.u32 %v510, 7
      %v512 = vsub.s32 0, %v511
      %v513 = vrot.slane %v508, %v512
      %vm515 = vcmask 130048
      %v517 = vsel %vm515, %v490, 0
      %v520 = vsel %vm515, %v491, 0
      %v523 = vsel %vm515, %v492, 0
      %v526 = vsel %vm515, %v493, 0
      %v529 = vsel %vm515, %v494, 0
      %v532 = vsel %vm515, %v495, 0
      %v535 = vsel %vm515, %v496, 0
      %v538 = vsel %vm515, %v497, 0
      %v541 = vsel %vm515, %v498, 0
      %v544 = vsel %vm515, %v499, 0
      %v547 = vsel %vm515, %v500, 0
      %v550 = vsel %vm515, %v501, 0
      %v553 = vsel %vm515, %v502, 0
      %v556 = vsel %vm515, %v503, 0
      %v559 = vsel %vm515, %v504, 0
      %v562 = vsel %vm515, %v505, 0
      %564 = vmatprep.subr.mxu0 0.0
      %565 = vmatpush1.msra.mxu0 0.0
      %566 = vmatprep.subr.mxu0 0.0
      %567 = vmatpush1.msra.mxu0 0.0
      %568 = vmatprep.subr.mxu0 0.0
      %569 = vmatpush1.msra.mxu0 0.0
      %570 = vmatprep.subr.mxu0 0.0
      %571 = vmatpush1.msra.mxu0 0.0
      %572 = vmatprep.subr.mxu0 0.0
      %573 = vmatpush1.msra.mxu0 0.0
      %574 = vmatprep.subr.mxu0 0.0
      %575 = vmatpush1.msra.mxu0 0.0
      %576 = vmatprep.subr.mxu0 0.0
      %577 = vmatpush1.msra.mxu0 0.0
      %578 = vmatprep.subr.mxu0 0.0
      %579 = vmatpush1.msra.mxu0 0.0
      %580 = vmatprep.subr.mxu0 0.0
      %581 = vmatpush1.msra.mxu0 0.0
      %582 = vmatprep.subr.mxu0 0.0
      %583 = vmatpush1.msra.mxu0 0.0
      %584 = vmatprep.subr.mxu0 0.0
      %585 = vmatpush1.msra.mxu0 0.0
      %586 = vmatprep.subr.mxu0 0.0
      %587 = vmatpush1.msra.mxu0 0.0
      %588 = vmatprep.subr.mxu0 0.0
      %589 = vmatpush1.msra.mxu0 0.0
      %590 = vmatprep.subr.mxu0 0.0
      %591 = vmatpush1.msra.mxu0 0.0
      %592 = vmatprep.subr.mxu0 0.0
      %593 = vmatpush1.msra.mxu0 %v507
      %594 = vmatprep.subr.mxu0 0.0
      %595 = vmatpush1.msra.mxu0 %v506
      %596 = vmatprep.subr.mxu0 0.0
      %597 = vmatpush2.msra.mxu0 0.0
      %598 = vmatprep.subr.mxu0 0.0
      %599 = vmatpush2.msra.mxu0 0.0
      %600 = vmatprep.subr.mxu0 0.0
      %601 = vmatpush2.msra.mxu0 0.0
      %602 = vmatprep.subr.mxu0 0.0
      %603 = vmatpush2.msra.mxu0 0.0
      %604 = vmatprep.subr.mxu0 0.0
      %605 = vmatpush2.msra.mxu0 0.0
      %606 = vmatprep.subr.mxu0 0.0
      %607 = vmatpush2.msra.mxu0 0.0
      %608 = vmatprep.subr.mxu0 0.0
      %609 = vmatpush2.msra.mxu0 0.0
      %610 = vmatprep.subr.mxu0 0.0
      %611 = vmatpush2.msra.mxu0 0.0
      %612 = vmatprep.subr.mxu0 0.0
      %613 = vmatpush2.msra.mxu0 0.0
      %614 = vmatprep.subr.mxu0 0.0
      %615 = vmatpush2.msra.mxu0 0.0
      %616 = vmatprep.subr.mxu0 0.0
      %617 = vmatpush2.msra.mxu0 0.0
      %618 = vmatprep.subr.mxu0 0.0
      %619 = vmatpush2.msra.mxu0 0.0
      %620 = vmatprep.subr.mxu0 0.0
      %621 = vmatpush2.msra.mxu0 0.0
      %622 = vmatprep.subr.mxu0 0.0
      %623 = vmatpush2.msra.mxu0 0.0
      %624 = vmatprep.subr.mxu0 0.0
      %625 = vmatpush2.msra.mxu0 0.0
      %626 = vmatprep.subr.mxu0 0.0
      %627 = vmatpush2.msra.mxu0 0.0
      %628 = vmatprep.mubr.f32.mxu0 0.0
      %629 = vmatmul.mubr.f32.gmra.mxu0 %v517
      %v630 = vpop.f32.mrf.mxu0
      %v631 = vadd.f32 %v513, %v630
      %v632 = vpop.f32.mrf.mxu0
      %633 = vmatprep.mubr.f32.mxu0 0.0
      %634 = vmatmul.mubr.f32.gmra.mxu0 %v520
      %v635 = vpop.f32.mrf.mxu0
      %v636 = vadd.f32 %v513, %v635
      %v637 = vpop.f32.mrf.mxu0
      %638 = vmatprep.mubr.f32.mxu0 0.0
      %639 = vmatmul.mubr.f32.gmra.mxu0 %v523
      %v640 = vpop.f32.mrf.mxu0
      %v641 = vadd.f32 %v513, %v640
      %v642 = vpop.f32.mrf.mxu0
      %643 = vmatprep.mubr.f32.mxu0 0.0
      %644 = vmatmul.mubr.f32.gmra.mxu0 %v526
      %v645 = vpop.f32.mrf.mxu0
      %v646 = vadd.f32 %v513, %v645
      %v647 = vpop.f32.mrf.mxu0
      %648 = vmatprep.mubr.f32.mxu0 0.0
      %649 = vmatmul.mubr.f32.gmra.mxu0 %v529
      %v650 = vpop.f32.mrf.mxu0
      %v651 = vadd.f32 %v513, %v650
      %v652 = vpop.f32.mrf.mxu0
      %653 = vmatprep.mubr.f32.mxu0 0.0
      %654 = vmatmul.mubr.f32.gmra.mxu0 %v532
      %v655 = vpop.f32.mrf.mxu0
      %v656 = vadd.f32 %v513, %v655
      %v657 = vpop.f32.mrf.mxu0
      %658 = vmatprep.mubr.f32.mxu0 0.0
      %659 = vmatmul.mubr.f32.gmra.mxu0 %v535
      %v660 = vpop.f32.mrf.mxu0
      %v661 = vadd.f32 %v513, %v660
      %v662 = vpop.f32.mrf.mxu0
      %663 = vmatprep.mubr.f32.mxu0 0.0
      %664 = vmatmul.mubr.f32.gmra.mxu0 %v538
      %v665 = vpop.f32.mrf.mxu0
      %v666 = vadd.f32 %v513, %v665
      %v667 = vpop.f32.mrf.mxu0
      %668 = vmatprep.mubr.f32.mxu0 0.0
      %669 = vmatmul.mubr.f32.gmra.mxu0 %v541
      %v670 = vpop.f32.mrf.mxu0
      %v671 = vadd.f32 %v513, %v670
      %v672 = vpop.f32.mrf.mxu0
      %673 = vmatprep.mubr.f32.mxu0 0.0
      %674 = vmatmul.mubr.f32.gmra.mxu0 %v544
      %v675 = vpop.f32.mrf.mxu0
      %v676 = vadd.f32 %v513, %v675
      %v677 = vpop.f32.mrf.mxu0
      %678 = vmatprep.mubr.f32.mxu0 0.0
      %679 = vmatmul.mubr.f32.gmra.mxu0 %v547
      %v680 = vpop.f32.mrf.mxu0
      %v681 = vadd.f32 %v513, %v680
      %v682 = vpop.f32.mrf.mxu0
      %683 = vmatprep.mubr.f32.mxu0 0.0
      %684 = vmatmul.mubr.f32.gmra.mxu0 %v550
      %v685 = vpop.f32.mrf.mxu0
      %v686 = vadd.f32 %v513, %v685
      %v687 = vpop.f32.mrf.mxu0
      %688 = vmatprep.mubr.f32.mxu0 0.0
      %689 = vmatmul.mubr.f32.gmra.mxu0 %v553
      %v690 = vpop.f32.mrf.mxu0
      %v691 = vadd.f32 %v513, %v690
      %v692 = vpop.f32.mrf.mxu0
      %693 = vmatprep.mubr.f32.mxu0 0.0
      %694 = vmatmul.mubr.f32.gmra.mxu0 %v556
      %v695 = vpop.f32.mrf.mxu0
      %v696 = vadd.f32 %v513, %v695
      %v697 = vpop.f32.mrf.mxu0
      %698 = vmatprep.mubr.f32.mxu0 0.0
      %699 = vmatmul.mubr.f32.gmra.mxu0 %v559
      %v700 = vpop.f32.mrf.mxu0
      %v701 = vadd.f32 %v513, %v700
      %v702 = vpop.f32.mrf.mxu0
      %703 = vmatprep.mubr.f32.mxu0 0.0
      %704 = vmatmul.mubr.f32.gmra.mxu0 %v562
      %v705 = vpop.f32.mrf.mxu0
      %v706 = vadd.f32 %v513, %v705
      %v707 = vpop.f32.mrf.mxu0
      %708 = vdwg.mxu0
      %v709 = vmax.f32 %v631, 0.0
      %v710 = vmax.f32 %v636, 0.0
      %v711 = vmax.f32 %v641, 0.0
      %v712 = vmax.f32 %v646, 0.0
      %v713 = vmax.f32 %v651, 0.0
      %v714 = vmax.f32 %v656, 0.0
      %v715 = vmax.f32 %v661, 0.0
      %v716 = vmax.f32 %v666, 0.0
      %v717 = vmax.f32 %v671, 0.0
      %v718 = vmax.f32 %v676, 0.0
      %v719 = vmax.f32 %v681, 0.0
      %v720 = vmax.f32 %v686, 0.0
      %v721 = vmax.f32 %v691, 0.0
      %v722 = vmax.f32 %v696, 0.0
      %v723 = vmax.f32 %v701, 0.0
      %v724 = vmax.f32 %v706, 0.0
      %v725 = vld [vmem:[%s476] sm:$0xff]
      %v726 = vld [vmem:[%s476 + $0x8] sm:$0xff]
      %v727 = vld [vmem:[%s476 + $0x10] sm:$0xff]
      %v728 = vld [vmem:[%s476 + $0x18] sm:$0xff]
      %v729 = vld [vmem:[%s476 + $0x20] sm:$0xff]
      %v730 = vld [vmem:[%s476 + $0x28] sm:$0xff]
      %v731 = vld [vmem:[%s476 + $0x30] sm:$0xff]
      %v732 = vld [vmem:[%s476 + $0x38] sm:$0xff]
      %v733 = vld [vmem:[%s476 + $0x40] sm:$0xff]
      %v734 = vld [vmem:[%s476 + $0x48] sm:$0xff]
      %v735 = vld [vmem:[%s476 + $0x50] sm:$0xff]
      %v736 = vld [vmem:[%s476 + $0x58] sm:$0xff]
      %v737 = vld [vmem:[%s476 + $0x60] sm:$0xff]
      %v738 = vld [vmem:[%s476 + $0x68] sm:$0xff]
      %v739 = vld [vmem:[%s476 + $0x70] sm:$0xff]
      %v740 = vld [vmem:[%s476 + $0x78] sm:$0xff]
      %v741 = vld [vmem:[%s5] sm:$0xff]
      %v742 = vld [vmem:[%s5 + $0x8] sm:$0xff]
      %v743 = vld [vmem:[%s5 + $0x10] sm:$0xff]
      %v744 = vld [vmem:[%s6] sm:$0x1]
      %v746 = vlaneseq
      %v747 = vshrl.u32 %v746, 7
      %v748 = vsub.s32 0, %v747
      %v749 = vrot.slane %v744, %v748
      %vm751 = vcmask 195584
      %v753 = vsel %vm751, %v725, 0
      %v756 = vsel %vm751, %v726, 0
      %v759 = vsel %vm751, %v727, 0
      %v762 = vsel %vm751, %v728, 0
      %v765 = vsel %vm751, %v729, 0
      %v768 = vsel %vm751, %v730, 0
      %v771 = vsel %vm751, %v731, 0
      %v774 = vsel %vm751, %v732, 0
      %v777 = vsel %vm751, %v733, 0
      %v780 = vsel %vm751, %v734, 0
      %v783 = vsel %vm751, %v735, 0
      %v786 = vsel %vm751, %v736, 0
      %v789 = vsel %vm751, %v737, 0
      %v792 = vsel %vm751, %v738, 0
      %v795 = vsel %vm751, %v739, 0
      %v798 = vsel %vm751, %v740, 0
      %800 = vmatprep.subr.mxu0 0.0
      %801 = vmatpush1.msra.mxu0 0.0
      %802 = vmatprep.subr.mxu0 0.0
      %803 = vmatpush1.msra.mxu0 0.0
      %804 = vmatprep.subr.mxu0 0.0
      %805 = vmatpush1.msra.mxu0 0.0
      %806 = vmatprep.subr.mxu0 0.0
      %807 = vmatpush1.msra.mxu0 0.0
      %808 = vmatprep.subr.mxu0 0.0
      %809 = vmatpush1.msra.mxu0 0.0
      %810 = vmatprep.subr.mxu0 0.0
      %811 = vmatpush1.msra.mxu0 0.0
      %812 = vmatprep.subr.mxu0 0.0
      %813 = vmatpush1.msra.mxu0 0.0
      %814 = vmatprep.subr.mxu0 0.0
      %815 = vmatpush1.msra.mxu0 0.0
      %816 = vmatprep.subr.mxu0 0.0
      %817 = vmatpush1.msra.mxu0 0.0
      %818 = vmatprep.subr.mxu0 0.0
      %819 = vmatpush1.msra.mxu0 0.0
      %820 = vmatprep.subr.mxu0 0.0
      %821 = vmatpush1.msra.mxu0 0.0
      %822 = vmatprep.subr.mxu0 0.0
      %823 = vmatpush1.msra.mxu0 0.0
      %824 = vmatprep.subr.mxu0 0.0
      %825 = vmatpush1.msra.mxu0 0.0
      %826 = vmatprep.subr.mxu0 0.0
      %827 = vmatpush1.msra.mxu0 %v743
      %828 = vmatprep.subr.mxu0 0.0
      %829 = vmatpush1.msra.mxu0 %v742
      %830 = vmatprep.subr.mxu0 0.0
      %831 = vmatpush1.msra.mxu0 %v741
      %832 = vmatprep.subr.mxu0 0.0
      %833 = vmatpush2.msra.mxu0 0.0
      %834 = vmatprep.subr.mxu0 0.0
      %835 = vmatpush2.msra.mxu0 0.0
      %836 = vmatprep.subr.mxu0 0.0
      %837 = vmatpush2.msra.mxu0 0.0
      %838 = vmatprep.subr.mxu0 0.0
      %839 = vmatpush2.msra.mxu0 0.0
      %840 = vmatprep.subr.mxu0 0.0
      %841 = vmatpush2.msra.mxu0 0.0
      %842 = vmatprep.subr.mxu0 0.0
      %843 = vmatpush2.msra.mxu0 0.0
      %844 = vmatprep.subr.mxu0 0.0
      %845 = vmatpush2.msra.mxu0 0.0
      %846 = vmatprep.subr.mxu0 0.0
      %847 = vmatpush2.msra.mxu0 0.0
      %848 = vmatprep.subr.mxu0 0.0
      %849 = vmatpush2.msra.mxu0 0.0
      %850 = vmatprep.subr.mxu0 0.0
      %851 = vmatpush2.msra.mxu0 0.0
      %852 = vmatprep.subr.mxu0 0.0
      %853 = vmatpush2.msra.mxu0 0.0
      %854 = vmatprep.subr.mxu0 0.0
      %855 = vmatpush2.msra.mxu0 0.0
      %856 = vmatprep.subr.mxu0 0.0
      %857 = vmatpush2.msra.mxu0 0.0
      %858 = vmatprep.subr.mxu0 0.0
      %859 = vmatpush2.msra.mxu0 0.0
      %860 = vmatprep.subr.mxu0 0.0
      %861 = vmatpush2.msra.mxu0 0.0
      %862 = vmatprep.subr.mxu0 0.0
      %863 = vmatpush2.msra.mxu0 0.0
      %864 = vmatprep.mubr.f32.mxu0 0.0
      %865 = vmatmul.mubr.f32.gmra.mxu0 %v753
      %v866 = vpop.f32.mrf.mxu0
      %v867 = vadd.f32 %v749, %v866
      %v868 = vpop.f32.mrf.mxu0
      %869 = vmatprep.mubr.f32.mxu0 0.0
      %870 = vmatmul.mubr.f32.gmra.mxu0 %v756
      %v871 = vpop.f32.mrf.mxu0
      %v872 = vadd.f32 %v749, %v871
      %v873 = vpop.f32.mrf.mxu0
      %874 = vmatprep.mubr.f32.mxu0 0.0
      %875 = vmatmul.mubr.f32.gmra.mxu0 %v759
      %v876 = vpop.f32.mrf.mxu0
      %v877 = vadd.f32 %v749, %v876
      %v878 = vpop.f32.mrf.mxu0
      %879 = vmatprep.mubr.f32.mxu0 0.0
      %880 = vmatmul.mubr.f32.gmra.mxu0 %v762
      %v881 = vpop.f32.mrf.mxu0
      %v882 = vadd.f32 %v749, %v881
      %v883 = vpop.f32.mrf.mxu0
      %884 = vmatprep.mubr.f32.mxu0 0.0
      %885 = vmatmul.mubr.f32.gmra.mxu0 %v765
      %v886 = vpop.f32.mrf.mxu0
      %v887 = vadd.f32 %v749, %v886
      %v888 = vpop.f32.mrf.mxu0
      %889 = vmatprep.mubr.f32.mxu0 0.0
      %890 = vmatmul.mubr.f32.gmra.mxu0 %v768
      %v891 = vpop.f32.mrf.mxu0
      %v892 = vadd.f32 %v749, %v891
      %v893 = vpop.f32.mrf.mxu0
      %894 = vmatprep.mubr.f32.mxu0 0.0
      %895 = vmatmul.mubr.f32.gmra.mxu0 %v771
      %v896 = vpop.f32.mrf.mxu0
      %v897 = vadd.f32 %v749, %v896
      %v898 = vpop.f32.mrf.mxu0
      %899 = vmatprep.mubr.f32.mxu0 0.0
      %900 = vmatmul.mubr.f32.gmra.mxu0 %v774
      %v901 = vpop.f32.mrf.mxu0
      %v902 = vadd.f32 %v749, %v901
      %v903 = vpop.f32.mrf.mxu0
      %904 = vmatprep.mubr.f32.mxu0 0.0
      %905 = vmatmul.mubr.f32.gmra.mxu0 %v777
      %v906 = vpop.f32.mrf.mxu0
      %v907 = vadd.f32 %v749, %v906
      %v908 = vpop.f32.mrf.mxu0
      %909 = vmatprep.mubr.f32.mxu0 0.0
      %910 = vmatmul.mubr.f32.gmra.mxu0 %v780
      %v911 = vpop.f32.mrf.mxu0
      %v912 = vadd.f32 %v749, %v911
      %v913 = vpop.f32.mrf.mxu0
      %914 = vmatprep.mubr.f32.mxu0 0.0
      %915 = vmatmul.mubr.f32.gmra.mxu0 %v783
      %v916 = vpop.f32.mrf.mxu0
      %v917 = vadd.f32 %v749, %v916
      %v918 = vpop.f32.mrf.mxu0
      %919 = vmatprep.mubr.f32.mxu0 0.0
      %920 = vmatmul.mubr.f32.gmra.mxu0 %v786
      %v921 = vpop.f32.mrf.mxu0
      %v922 = vadd.f32 %v749, %v921
      %v923 = vpop.f32.mrf.mxu0
      %924 = vmatprep.mubr.f32.mxu0 0.0
      %925 = vmatmul.mubr.f32.gmra.mxu0 %v789
      %v926 = vpop.f32.mrf.mxu0
      %v927 = vadd.f32 %v749, %v926
      %v928 = vpop.f32.mrf.mxu0
      %929 = vmatprep.mubr.f32.mxu0 0.0
      %930 = vmatmul.mubr.f32.gmra.mxu0 %v792
      %v931 = vpop.f32.mrf.mxu0
      %v932 = vadd.f32 %v749, %v931
      %v933 = vpop.f32.mrf.mxu0
      %934 = vmatprep.mubr.f32.mxu0 0.0
      %935 = vmatmul.mubr.f32.gmra.mxu0 %v795
      %v936 = vpop.f32.mrf.mxu0
      %v937 = vadd.f32 %v749, %v936
      %v938 = vpop.f32.mrf.mxu0
      %939 = vmatprep.mubr.f32.mxu0 0.0
      %940 = vmatmul.mubr.f32.gmra.mxu0 %v798
      %v941 = vpop.f32.mrf.mxu0
      %v942 = vadd.f32 %v749, %v941
      %v943 = vpop.f32.mrf.mxu0
      %944 = vdwg.mxu0
      %v945 = vmax.f32 %v867, 0.0
      %v946 = vmax.f32 %v872, 0.0
      %v947 = vmax.f32 %v877, 0.0
      %v948 = vmax.f32 %v882, 0.0
      %v949 = vmax.f32 %v887, 0.0
      %v950 = vmax.f32 %v892, 0.0
      %v951 = vmax.f32 %v897, 0.0
      %v952 = vmax.f32 %v902, 0.0
      %v953 = vmax.f32 %v907, 0.0
      %v954 = vmax.f32 %v912, 0.0
      %v955 = vmax.f32 %v917, 0.0
      %v956 = vmax.f32 %v922, 0.0
      %v957 = vmax.f32 %v927, 0.0
      %v958 = vmax.f32 %v932, 0.0
      %v959 = vmax.f32 %v937, 0.0
      %v960 = vmax.f32 %v942, 0.0
      %v961 = vld [vmem:[%s482] sm:$0xff]
      %v962 = vld [vmem:[%s482 + $0x8] sm:$0xff]
      %v963 = vld [vmem:[%s482 + $0x10] sm:$0xff]
      %v964 = vld [vmem:[%s482 + $0x18] sm:$0xff]
      %v965 = vld [vmem:[%s482 + $0x20] sm:$0xff]
      %v966 = vld [vmem:[%s482 + $0x28] sm:$0xff]
      %v967 = vld [vmem:[%s482 + $0x30] sm:$0xff]
      %v968 = vld [vmem:[%s482 + $0x38] sm:$0xff]
      %v969 = vld [vmem:[%s482 + $0x40] sm:$0xff]
      %v970 = vld [vmem:[%s482 + $0x48] sm:$0xff]
      %v971 = vld [vmem:[%s482 + $0x50] sm:$0xff]
      %v972 = vld [vmem:[%s482 + $0x58] sm:$0xff]
      %v973 = vld [vmem:[%s482 + $0x60] sm:$0xff]
      %v974 = vld [vmem:[%s482 + $0x68] sm:$0xff]
      %v975 = vld [vmem:[%s482 + $0x70] sm:$0xff]
      %v976 = vld [vmem:[%s482 + $0x78] sm:$0xff]
      %v977 = vld [vmem:[%s7] sm:$0xff]
      %v978 = vld [vmem:[%s7 + $0x8] sm:$0xff]
      %v979 = vld [vmem:[%s7 + $0x10] sm:$0xff]
      %v980 = vld [vmem:[%s7 + $0x18] sm:$0xff]
      %v981 = vld [vmem:[%s8] sm:$0x1]
      %v983 = vlaneseq
      %v984 = vshrl.u32 %v983, 7
      %v985 = vsub.s32 0, %v984
      %v986 = vrot.slane %v981, %v985
      %vm988 = vcmask 261120
      %v990 = vsel %vm988, %v961, 0
      %v993 = vsel %vm988, %v962, 0
      %v996 = vsel %vm988, %v963, 0
      %v999 = vsel %vm988, %v964, 0
      %v1002 = vsel %vm988, %v965, 0
      %v1005 = vsel %vm988, %v966, 0
      %v1008 = vsel %vm988, %v967, 0
      %v1011 = vsel %vm988, %v968, 0
      %v1014 = vsel %vm988, %v969, 0
      %v1017 = vsel %vm988, %v970, 0
      %v1020 = vsel %vm988, %v971, 0
      %v1023 = vsel %vm988, %v972, 0
      %v1026 = vsel %vm988, %v973, 0
      %v1029 = vsel %vm988, %v974, 0
      %v1032 = vsel %vm988, %v975, 0
      %v1035 = vsel %vm988, %v976, 0
      %1037 = vmatprep.subr.mxu0 0.0
      %1038 = vmatpush1.msra.mxu0 0.0
      %1039 = vmatprep.subr.mxu0 0.0
      %1040 = vmatpush1.msra.mxu0 0.0
      %1041 = vmatprep.subr.mxu0 0.0
      %1042 = vmatpush1.msra.mxu0 0.0
      %1043 = vmatprep.subr.mxu0 0.0
      %1044 = vmatpush1.msra.mxu0 0.0
      %1045 = vmatprep.subr.mxu0 0.0
      %1046 = vmatpush1.msra.mxu0 0.0
      %1047 = vmatprep.subr.mxu0 0.0
      %1048 = vmatpush1.msra.mxu0 0.0
      %1049 = vmatprep.subr.mxu0 0.0
      %1050 = vmatpush1.msra.mxu0 0.0
      %1051 = vmatprep.subr.mxu0 0.0
      %1052 = vmatpush1.msra.mxu0 0.0
      %1053 = vmatprep.subr.mxu0 0.0
      %1054 = vmatpush1.msra.mxu0 0.0
      %1055 = vmatprep.subr.mxu0 0.0
      %1056 = vmatpush1.msra.mxu0 0.0
      %1057 = vmatprep.subr.mxu0 0.0
      %1058 = vmatpush1.msra.mxu0 0.0
      %1059 = vmatprep.subr.mxu0 0.0
      %1060 = vmatpush1.msra.mxu0 0.0
      %1061 = vmatprep.subr.mxu0 0.0
      %1062 = vmatpush1.msra.mxu0 %v980
      %1063 = vmatprep.subr.mxu0 0.0
      %1064 = vmatpush1.msra.mxu0 %v979
      %1065 = vmatprep.subr.mxu0 0.0
      %1066 = vmatpush1.msra.mxu0 %v978
      %1067 = vmatprep.subr.mxu0 0.0
      %1068 = vmatpush1.msra.mxu0 %v977
      %1069 = vmatprep.subr.mxu0 0.0
      %1070 = vmatpush2.msra.mxu0 0.0
      %1071 = vmatprep.subr.mxu0 0.0
      %1072 = vmatpush2.msra.mxu0 0.0
      %1073 = vmatprep.subr.mxu0 0.0
      %1074 = vmatpush2.msra.mxu0 0.0
      %1075 = vmatprep.subr.mxu0 0.0
      %1076 = vmatpush2.msra.mxu0 0.0
      %1077 = vmatprep.subr.mxu0 0.0
      %1078 = vmatpush2.msra.mxu0 0.0
      %1079 = vmatprep.subr.mxu0 0.0
      %1080 = vmatpush2.msra.mxu0 0.0
      %1081 = vmatprep.subr.mxu0 0.0
      %1082 = vmatpush2.msra.mxu0 0.0
      %1083 = vmatprep.subr.mxu0 0.0
      %1084 = vmatpush2.msra.mxu0 0.0
      %1085 = vmatprep.subr.mxu0 0.0
      %1086 = vmatpush2.msra.mxu0 0.0
      %1087 = vmatprep.subr.mxu0 0.0
      %1088 = vmatpush2.msra.mxu0 0.0
      %1089 = vmatprep.subr.mxu0 0.0
      %1090 = vmatpush2.msra.mxu0 0.0
      %1091 = vmatprep.subr.mxu0 0.0
      %1092 = vmatpush2.msra.mxu0 0.0
      %1093 = vmatprep.subr.mxu0 0.0
      %1094 = vmatpush2.msra.mxu0 0.0
      %1095 = vmatprep.subr.mxu0 0.0
      %1096 = vmatpush2.msra.mxu0 0.0
      %1097 = vmatprep.subr.mxu0 0.0
      %1098 = vmatpush2.msra.mxu0 0.0
      %1099 = vmatprep.subr.mxu0 0.0
      %1100 = vmatpush2.msra.mxu0 0.0
      %1101 = vmatprep.mubr.f32.mxu0 0.0
      %1102 = vmatmul.mubr.f32.gmra.mxu0 %v990
      %v1103 = vpop.f32.mrf.mxu0
      %v1104 = vadd.f32 %v986, %v1103
      %v1105 = vpop.f32.mrf.mxu0
      %1106 = vmatprep.mubr.f32.mxu0 0.0
      %1107 = vmatmul.mubr.f32.gmra.mxu0 %v993
      %v1108 = vpop.f32.mrf.mxu0
      %v1109 = vadd.f32 %v986, %v1108
      %v1110 = vpop.f32.mrf.mxu0
      %1111 = vmatprep.mubr.f32.mxu0 0.0
      %1112 = vmatmul.mubr.f32.gmra.mxu0 %v996
      %v1113 = vpop.f32.mrf.mxu0
      %v1114 = vadd.f32 %v986, %v1113
      %v1115 = vpop.f32.mrf.mxu0
      %1116 = vmatprep.mubr.f32.mxu0 0.0
      %1117 = vmatmul.mubr.f32.gmra.mxu0 %v999
      %v1118 = vpop.f32.mrf.mxu0
      %v1119 = vadd.f32 %v986, %v1118
      %v1120 = vpop.f32.mrf.mxu0
      %1121 = vmatprep.mubr.f32.mxu0 0.0
      %1122 = vmatmul.mubr.f32.gmra.mxu0 %v1002
      %v1123 = vpop.f32.mrf.mxu0
      %v1124 = vadd.f32 %v986, %v1123
      %v1125 = vpop.f32.mrf.mxu0
      %1126 = vmatprep.mubr.f32.mxu0 0.0
      %1127 = vmatmul.mubr.f32.gmra.mxu0 %v1005
      %v1128 = vpop.f32.mrf.mxu0
      %v1129 = vadd.f32 %v986, %v1128
      %v1130 = vpop.f32.mrf.mxu0
      %1131 = vmatprep.mubr.f32.mxu0 0.0
      %1132 = vmatmul.mubr.f32.gmra.mxu0 %v1008
      %v1133 = vpop.f32.mrf.mxu0
      %v1134 = vadd.f32 %v986, %v1133
      %v1135 = vpop.f32.mrf.mxu0
      %1136 = vmatprep.mubr.f32.mxu0 0.0
      %1137 = vmatmul.mubr.f32.gmra.mxu0 %v1011
      %v1138 = vpop.f32.mrf.mxu0
      %v1139 = vadd.f32 %v986, %v1138
      %v1140 = vpop.f32.mrf.mxu0
      %1141 = vmatprep.mubr.f32.mxu0 0.0
      %1142 = vmatmul.mubr.f32.gmra.mxu0 %v1014
      %v1143 = vpop.f32.mrf.mxu0
      %v1144 = vadd.f32 %v986, %v1143
      %v1145 = vpop.f32.mrf.mxu0
      %1146 = vmatprep.mubr.f32.mxu0 0.0
      %1147 = vmatmul.mubr.f32.gmra.mxu0 %v1017
      %v1148 = vpop.f32.mrf.mxu0
      %v1149 = vadd.f32 %v986, %v1148
      %v1150 = vpop.f32.mrf.mxu0
      %1151 = vmatprep.mubr.f32.mxu0 0.0
      %1152 = vmatmul.mubr.f32.gmra.mxu0 %v1020
      %v1153 = vpop.f32.mrf.mxu0
      %v1154 = vadd.f32 %v986, %v1153
      %v1155 = vpop.f32.mrf.mxu0
      %1156 = vmatprep.mubr.f32.mxu0 0.0
      %1157 = vmatmul.mubr.f32.gmra.mxu0 %v1023
      %v1158 = vpop.f32.mrf.mxu0
      %v1159 = vadd.f32 %v986, %v1158
      %v1160 = vpop.f32.mrf.mxu0
      %1161 = vmatprep.mubr.f32.mxu0 0.0
      %1162 = vmatmul.mubr.f32.gmra.mxu0 %v1026
      %v1163 = vpop.f32.mrf.mxu0
      %v1164 = vadd.f32 %v986, %v1163
      %v1165 = vpop.f32.mrf.mxu0
      %1166 = vmatprep.mubr.f32.mxu0 0.0
      %1167 = vmatmul.mubr.f32.gmra.mxu0 %v1029
      %v1168 = vpop.f32.mrf.mxu0
      %v1169 = vadd.f32 %v986, %v1168
      %v1170 = vpop.f32.mrf.mxu0
      %1171 = vmatprep.mubr.f32.mxu0 0.0
      %1172 = vmatmul.mubr.f32.gmra.mxu0 %v1032
      %v1173 = vpop.f32.mrf.mxu0
      %v1174 = vadd.f32 %v986, %v1173
      %v1175 = vpop.f32.mrf.mxu0
      %1176 = vmatprep.mubr.f32.mxu0 0.0
      %1177 = vmatmul.mubr.f32.gmra.mxu0 %v1035
      %v1178 = vpop.f32.mrf.mxu0
      %v1179 = vadd.f32 %v986, %v1178
      %v1180 = vpop.f32.mrf.mxu0
      %1181 = vdwg.mxu0
      %v1182 = vmax.f32 %v1104, 0.0
      %v1183 = vmax.f32 %v1109, 0.0
      %v1184 = vmax.f32 %v1114, 0.0
      %v1185 = vmax.f32 %v1119, 0.0
      %v1186 = vmax.f32 %v1124, 0.0
      %v1187 = vmax.f32 %v1129, 0.0
      %v1188 = vmax.f32 %v1134, 0.0
      %v1189 = vmax.f32 %v1139, 0.0
      %v1190 = vmax.f32 %v1144, 0.0
      %v1191 = vmax.f32 %v1149, 0.0
      %v1192 = vmax.f32 %v1154, 0.0
      %v1193 = vmax.f32 %v1159, 0.0
      %v1194 = vmax.f32 %v1164, 0.0
      %v1195 = vmax.f32 %v1169, 0.0
      %v1196 = vmax.f32 %v1174, 0.0
      %v1197 = vmax.f32 %v1179, 0.0
      %1214 = vrot.lane.b32.xlu0 %v945, 64
      %v1215 = vpop.permute.xlu0 %1214
      %1216 = vrot.lane.b32.xlu0 %v946, 64
      %v1217 = vpop.permute.xlu0 %1216
      %1218 = vrot.lane.b32.xlu0 %v947, 64
      %v1219 = vpop.permute.xlu0 %1218
      %1220 = vrot.lane.b32.xlu0 %v948, 64
      %v1221 = vpop.permute.xlu0 %1220
      %1222 = vrot.lane.b32.xlu0 %v949, 64
      %v1223 = vpop.permute.xlu0 %1222
      %1224 = vrot.lane.b32.xlu0 %v950, 64
      %v1225 = vpop.permute.xlu0 %1224
      %1226 = vrot.lane.b32.xlu0 %v951, 64
      %v1227 = vpop.permute.xlu0 %1226
      %1228 = vrot.lane.b32.xlu0 %v952, 64
      %v1229 = vpop.permute.xlu0 %1228
      %1230 = vrot.lane.b32.xlu0 %v953, 64
      %v1231 = vpop.permute.xlu0 %1230
      %1232 = vrot.lane.b32.xlu0 %v954, 64
      %v1233 = vpop.permute.xlu0 %1232
      %1234 = vrot.lane.b32.xlu0 %v955, 64
      %v1235 = vpop.permute.xlu0 %1234
      %1236 = vrot.lane.b32.xlu0 %v956, 64
      %v1237 = vpop.permute.xlu0 %1236
      %1238 = vrot.lane.b32.xlu0 %v957, 64
      %v1239 = vpop.permute.xlu0 %1238
      %1240 = vrot.lane.b32.xlu0 %v958, 64
      %v1241 = vpop.permute.xlu0 %1240
      %1242 = vrot.lane.b32.xlu0 %v959, 64
      %v1243 = vpop.permute.xlu0 %1242
      %1244 = vrot.lane.b32.xlu0 %v960, 64
      %v1245 = vpop.permute.xlu0 %1244
      %vm1262 = vcmask 523264
      %v1263 = vsel %vm1262, %v709, %v1215
      %v1264 = vsel %vm1262, %v710, %v1217
      %v1265 = vsel %vm1262, %v711, %v1219
      %v1266 = vsel %vm1262, %v712, %v1221
      %v1267 = vsel %vm1262, %v713, %v1223
      %v1268 = vsel %vm1262, %v714, %v1225
      %v1269 = vsel %vm1262, %v715, %v1227
      %v1270 = vsel %vm1262, %v716, %v1229
      %v1271 = vsel %vm1262, %v717, %v1231
      %v1272 = vsel %vm1262, %v718, %v1233
      %v1273 = vsel %vm1262, %v719, %v1235
      %v1274 = vsel %vm1262, %v720, %v1237
      %v1275 = vsel %vm1262, %v721, %v1239
      %v1276 = vsel %vm1262, %v722, %v1241
      %v1277 = vsel %vm1262, %v723, %v1243
      %v1278 = vsel %vm1262, %v724, %v1245
      %v1279 = vld [vmem:[%s9] sm:$0xff]
      %v1280 = vld [vmem:[%s9 + $0x8] sm:$0xff]
      %v1281 = vld [vmem:[%s9 + $0x10] sm:$0xff]
      %v1282 = vld [vmem:[%s9 + $0x18] sm:$0xff]
      %v1283 = vld [vmem:[%s9 + $0x20] sm:$0xff]
      %v1284 = vld [vmem:[%s9 + $0x28] sm:$0xff]
      %v1285 = vld [vmem:[%s9 + $0x30] sm:$0xff]
      %v1286 = vld [vmem:[%s9 + $0x38] sm:$0xff]
      %v1287 = vld [vmem:[%s9 + $0x40] sm:$0xff]
      %v1288 = vld [vmem:[%s9 + $0x48] sm:$0xff]
      %v1289 = vld [vmem:[%s9 + $0x50] sm:$0xff]
      %v1290 = vld [vmem:[%s9 + $0x58] sm:$0xff]
      %v1291 = vld [vmem:[%s9 + $0x60] sm:$0xff]
      %v1292 = vld [vmem:[%s9 + $0x68] sm:$0xff]
      %v1293 = vld [vmem:[%s9 + $0x70] sm:$0xff]
      %v1294 = vld [vmem:[%s9 + $0x78] sm:$0xff]
      %v1295 = vld [vmem:[%s9 + $0x80] sm:$0xff]
      %v1296 = vld [vmem:[%s9 + $0x88] sm:$0xff]
      %v1297 = vld [vmem:[%s9 + $0x90] sm:$0xff]
      %v1298 = vld [vmem:[%s9 + $0x98] sm:$0xff]
      %v1299 = vld [vmem:[%s9 + $0xa0] sm:$0xff]
      %v1300 = vld [vmem:[%s9 + $0xa8] sm:$0xff]
      %v1301 = vld [vmem:[%s9 + $0xb0] sm:$0xff]
      %v1302 = vld [vmem:[%s9 + $0xb8] sm:$0xff]
      %v1303 = vld [vmem:[%s10] sm:$0x1]
      %v1305 = vlaneseq
      %v1306 = vshrl.u32 %v1305, 7
      %v1307 = vsub.s32 0, %v1306
      %v1308 = vrot.slane %v1303, %v1307
      %v1311 = vsel %vm1262, %v1182, 0
      %v1314 = vsel %vm1262, %v1183, 0
      %v1317 = vsel %vm1262, %v1184, 0
      %v1320 = vsel %vm1262, %v1185, 0
      %v1323 = vsel %vm1262, %v1186, 0
      %v1326 = vsel %vm1262, %v1187, 0
      %v1329 = vsel %vm1262, %v1188, 0
      %v1332 = vsel %vm1262, %v1189, 0
      %v1335 = vsel %vm1262, %v1190, 0
      %v1338 = vsel %vm1262, %v1191, 0
      %v1341 = vsel %vm1262, %v1192, 0
      %v1344 = vsel %vm1262, %v1193, 0
      %v1347 = vsel %vm1262, %v1194, 0
      %v1350 = vsel %vm1262, %v1195, 0
      %v1353 = vsel %vm1262, %v1196, 0
      %v1356 = vsel %vm1262, %v1197, 0
      %1358 = vmatprep.subr.mxu0 0.0
      %1359 = vmatpush1.msra.mxu0 %v1294
      %1360 = vmatprep.subr.mxu0 0.0
      %1361 = vmatpush1.msra.mxu0 %v1293
      %1362 = vmatprep.subr.mxu0 0.0
      %1363 = vmatpush1.msra.mxu0 %v1292
      %1364 = vmatprep.subr.mxu0 0.0
      %1365 = vmatpush1.msra.mxu0 %v1291
      %1366 = vmatprep.subr.mxu0 0.0
      %1367 = vmatpush1.msra.mxu0 %v1290
      %1368 = vmatprep.subr.mxu0 0.0
      %1369 = vmatpush1.msra.mxu0 %v1289
      %1370 = vmatprep.subr.mxu0 0.0
      %1371 = vmatpush1.msra.mxu0 %v1288
      %1372 = vmatprep.subr.mxu0 0.0
      %1373 = vmatpush1.msra.mxu0 %v1287
      %1374 = vmatprep.subr.mxu0 0.0
      %1375 = vmatpush1.msra.mxu0 %v1286
      %1376 = vmatprep.subr.mxu0 0.0
      %1377 = vmatpush1.msra.mxu0 %v1285
      %1378 = vmatprep.subr.mxu0 0.0
      %1379 = vmatpush1.msra.mxu0 %v1284
      %1380 = vmatprep.subr.mxu0 0.0
      %1381 = vmatpush1.msra.mxu0 %v1283
      %1382 = vmatprep.subr.mxu0 0.0
      %1383 = vmatpush1.msra.mxu0 %v1282
      %1384 = vmatprep.subr.mxu0 0.0
      %1385 = vmatpush1.msra.mxu0 %v1281
      %1386 = vmatprep.subr.mxu0 0.0
      %1387 = vmatpush1.msra.mxu0 %v1280
      %1388 = vmatprep.subr.mxu0 0.0
      %1389 = vmatpush1.msra.mxu0 %v1279
      %1390 = vmatprep.subr.mxu0 0.0
      %1391 = vmatpush2.msra.mxu0 0.0
      %1392 = vmatprep.subr.mxu0 0.0
      %1393 = vmatpush2.msra.mxu0 0.0
      %1394 = vmatprep.subr.mxu0 0.0
      %1395 = vmatpush2.msra.mxu0 0.0
      %1396 = vmatprep.subr.mxu0 0.0
      %1397 = vmatpush2.msra.mxu0 0.0
      %1398 = vmatprep.subr.mxu0 0.0
      %1399 = vmatpush2.msra.mxu0 0.0
      %1400 = vmatprep.subr.mxu0 0.0
      %1401 = vmatpush2.msra.mxu0 0.0
      %1402 = vmatprep.subr.mxu0 0.0
      %1403 = vmatpush2.msra.mxu0 0.0
      %1404 = vmatprep.subr.mxu0 0.0
      %1405 = vmatpush2.msra.mxu0 0.0
      %1406 = vmatprep.subr.mxu0 0.0
      %1407 = vmatpush2.msra.mxu0 %v1302
      %1408 = vmatprep.subr.mxu0 0.0
      %1409 = vmatpush2.msra.mxu0 %v1301
      %1410 = vmatprep.subr.mxu0 0.0
      %1411 = vmatpush2.msra.mxu0 %v1300
      %1412 = vmatprep.subr.mxu0 0.0
      %1413 = vmatpush2.msra.mxu0 %v1299
      %1414 = vmatprep.subr.mxu0 0.0
      %1415 = vmatpush2.msra.mxu0 %v1298
      %1416 = vmatprep.subr.mxu0 0.0
      %1417 = vmatpush2.msra.mxu0 %v1297
      %1418 = vmatprep.subr.mxu0 0.0
      %1419 = vmatpush2.msra.mxu0 %v1296
      %1420 = vmatprep.subr.mxu0 0.0
      %1421 = vmatpush2.msra.mxu0 %v1295
      %1422 = vmatprep.mubr.f32.mxu0 %v1311
      %1423 = vmatmul.mubr.f32.gmra.mxu0 %v1263
      %v1424 = vpop.f32.mrf.mxu0
      %v1425 = vadd.f32 %v1308, %v1424
      %v1426 = vpop.f32.mrf.mxu0
      %1427 = vmatprep.mubr.f32.mxu0 %v1314
      %1428 = vmatmul.mubr.f32.gmra.mxu0 %v1264
      %v1429 = vpop.f32.mrf.mxu0
      %v1430 = vadd.f32 %v1308, %v1429
      %v1431 = vpop.f32.mrf.mxu0
      %1432 = vmatprep.mubr.f32.mxu0 %v1317
      %1433 = vmatmul.mubr.f32.gmra.mxu0 %v1265
      %v1434 = vpop.f32.mrf.mxu0
      %v1435 = vadd.f32 %v1308, %v1434
      %v1436 = vpop.f32.mrf.mxu0
      %1437 = vmatprep.mubr.f32.mxu0 %v1320
      %1438 = vmatmul.mubr.f32.gmra.mxu0 %v1266
      %v1439 = vpop.f32.mrf.mxu0
      %v1440 = vadd.f32 %v1308, %v1439
      %v1441 = vpop.f32.mrf.mxu0
      %1442 = vmatprep.mubr.f32.mxu0 %v1323
      %1443 = vmatmul.mubr.f32.gmra.mxu0 %v1267
      %v1444 = vpop.f32.mrf.mxu0
      %v1445 = vadd.f32 %v1308, %v1444
      %v1446 = vpop.f32.mrf.mxu0
      %1447 = vmatprep.mubr.f32.mxu0 %v1326
      %1448 = vmatmul.mubr.f32.gmra.mxu0 %v1268
      %v1449 = vpop.f32.mrf.mxu0
      %v1450 = vadd.f32 %v1308, %v1449
      %v1451 = vpop.f32.mrf.mxu0
      %1452 = vmatprep.mubr.f32.mxu0 %v1329
      %1453 = vmatmul.mubr.f32.gmra.mxu0 %v1269
      %v1454 = vpop.f32.mrf.mxu0
      %v1455 = vadd.f32 %v1308, %v1454
      %v1456 = vpop.f32.mrf.mxu0
      %1457 = vmatprep.mubr.f32.mxu0 %v1332
      %1458 = vmatmul.mubr.f32.gmra.mxu0 %v1270
      %v1459 = vpop.f32.mrf.mxu0
      %v1460 = vadd.f32 %v1308, %v1459
      %v1461 = vpop.f32.mrf.mxu0
      %1462 = vmatprep.mubr.f32.mxu0 %v1335
      %1463 = vmatmul.mubr.f32.gmra.mxu0 %v1271
      %v1464 = vpop.f32.mrf.mxu0
      %v1465 = vadd.f32 %v1308, %v1464
      %v1466 = vpop.f32.mrf.mxu0
      %1467 = vmatprep.mubr.f32.mxu0 %v1338
      %1468 = vmatmul.mubr.f32.gmra.mxu0 %v1272
      %v1469 = vpop.f32.mrf.mxu0
      %v1470 = vadd.f32 %v1308, %v1469
      %v1471 = vpop.f32.mrf.mxu0
      %1472 = vmatprep.mubr.f32.mxu0 %v1341
      %1473 = vmatmul.mubr.f32.gmra.mxu0 %v1273
      %v1474 = vpop.f32.mrf.mxu0
      %v1475 = vadd.f32 %v1308, %v1474
      %v1476 = vpop.f32.mrf.mxu0
      %1477 = vmatprep.mubr.f32.mxu0 %v1344
      %1478 = vmatmul.mubr.f32.gmra.mxu0 %v1274
      %v1479 = vpop.f32.mrf.mxu0
      %v1480 = vadd.f32 %v1308, %v1479
      %v1481 = vpop.f32.mrf.mxu0
      %1482 = vmatprep.mubr.f32.mxu0 %v1347
      %1483 = vmatmul.mubr.f32.gmra.mxu0 %v1275
      %v1484 = vpop.f32.mrf.mxu0
      %v1485 = vadd.f32 %v1308, %v1484
      %v1486 = vpop.f32.mrf.mxu0
      %1487 = vmatprep.mubr.f32.mxu0 %v1350
      %1488 = vmatmul.mubr.f32.gmra.mxu0 %v1276
      %v1489 = vpop.f32.mrf.mxu0
      %v1490 = vadd.f32 %v1308, %v1489
      %v1491 = vpop.f32.mrf.mxu0
      %1492 = vmatprep.mubr.f32.mxu0 %v1353
      %1493 = vmatmul.mubr.f32.gmra.mxu0 %v1277
      %v1494 = vpop.f32.mrf.mxu0
      %v1495 = vadd.f32 %v1308, %v1494
      %v1496 = vpop.f32.mrf.mxu0
      %1497 = vmatprep.mubr.f32.mxu0 %v1356
      %1498 = vmatmul.mubr.f32.gmra.mxu0 %v1278
      %v1499 = vpop.f32.mrf.mxu0
      %v1500 = vadd.f32 %v1308, %v1499
      %v1501 = vpop.f32.mrf.mxu0
      %1502 = vdwg.mxu0
      %v1503 = vmax.f32 %v1425, 0.0
      %v1504 = vmax.f32 %v1430, 0.0
      %v1505 = vmax.f32 %v1435, 0.0
      %v1506 = vmax.f32 %v1440, 0.0
      %v1507 = vmax.f32 %v1445, 0.0
      %v1508 = vmax.f32 %v1450, 0.0
      %v1509 = vmax.f32 %v1455, 0.0
      %v1510 = vmax.f32 %v1460, 0.0
      %v1511 = vmax.f32 %v1465, 0.0
      %v1512 = vmax.f32 %v1470, 0.0
      %v1513 = vmax.f32 %v1475, 0.0
      %v1514 = vmax.f32 %v1480, 0.0
      %v1515 = vmax.f32 %v1485, 0.0
      %v1516 = vmax.f32 %v1490, 0.0
      %v1517 = vmax.f32 %v1495, 0.0
      %v1518 = vmax.f32 %v1500, 0.0
      %v1519 = vld [vmem:[%s11] sm:$0x1]
      %v1521 = vlaneseq
      %v1522 = vshrl.u32 %v1521, 7
      %v1523 = vsub.s32 0, %v1522
      %v1524 = vrot.slane %v1519, %v1523
      %v1526 = vmul.f32 %v1503, %v1524
      %v1527 = vmul.f32 %v1504, %v1524
      %v1528 = vmul.f32 %v1505, %v1524
      %v1529 = vmul.f32 %v1506, %v1524
      %v1530 = vmul.f32 %v1507, %v1524
      %v1531 = vmul.f32 %v1508, %v1524
      %v1532 = vmul.f32 %v1509, %v1524
      %v1533 = vmul.f32 %v1510, %v1524
      %v1534 = vmul.f32 %v1511, %v1524
      %v1535 = vmul.f32 %v1512, %v1524
      %v1536 = vmul.f32 %v1513, %v1524
      %v1537 = vmul.f32 %v1514, %v1524
      %v1538 = vmul.f32 %v1515, %v1524
      %v1539 = vmul.f32 %v1516, %v1524
      %v1540 = vmul.f32 %v1517, %v1524
      %v1541 = vmul.f32 %v1518, %v1524
      %v1542 = vsel %vm1262, %v1526, 0.0
      %1543 = vadd.xlane.f32.xlu0 %v1542
      %v1544 = vpop.xlane.xlu0 %1543
      %v1545 = vsel %vm1262, %v1527, 0.0
      %1546 = vadd.xlane.f32.xlu0 %v1545
      %v1547 = vpop.xlane.xlu0 %1546
      %v1548 = vsel %vm1262, %v1528, 0.0
      %1549 = vadd.xlane.f32.xlu0 %v1548
      %v1550 = vpop.xlane.xlu0 %1549
      %v1551 = vsel %vm1262, %v1529, 0.0
      %1552 = vadd.xlane.f32.xlu0 %v1551
      %v1553 = vpop.xlane.xlu0 %1552
      %v1554 = vsel %vm1262, %v1530, 0.0
      %1555 = vadd.xlane.f32.xlu0 %v1554
      %v1556 = vpop.xlane.xlu0 %1555
      %v1557 = vsel %vm1262, %v1531, 0.0
      %1558 = vadd.xlane.f32.xlu0 %v1557
      %v1559 = vpop.xlane.xlu0 %1558
      %v1560 = vsel %vm1262, %v1532, 0.0
      %1561 = vadd.xlane.f32.xlu0 %v1560
      %v1562 = vpop.xlane.xlu0 %1561
      %v1563 = vsel %vm1262, %v1533, 0.0
      %1564 = vadd.xlane.f32.xlu0 %v1563
      %v1565 = vpop.xlane.xlu0 %1564
      %v1566 = vsel %vm1262, %v1534, 0.0
      %1567 = vadd.xlane.f32.xlu0 %v1566
      %v1568 = vpop.xlane.xlu0 %1567
      %v1569 = vsel %vm1262, %v1535, 0.0
      %1570 = vadd.xlane.f32.xlu0 %v1569
      %v1571 = vpop.xlane.xlu0 %1570
      %v1572 = vsel %vm1262, %v1536, 0.0
      %1573 = vadd.xlane.f32.xlu0 %v1572
      %v1574 = vpop.xlane.xlu0 %1573
      %v1575 = vsel %vm1262, %v1537, 0.0
      %1576 = vadd.xlane.f32.xlu0 %v1575
      %v1577 = vpop.xlane.xlu0 %1576
      %v1578 = vsel %vm1262, %v1538, 0.0
      %1579 = vadd.xlane.f32.xlu0 %v1578
      %v1580 = vpop.xlane.xlu0 %1579
      %v1581 = vsel %vm1262, %v1539, 0.0
      %1582 = vadd.xlane.f32.xlu0 %v1581
      %v1583 = vpop.xlane.xlu0 %1582
      %v1584 = vsel %vm1262, %v1540, 0.0
      %1585 = vadd.xlane.f32.xlu0 %v1584
      %v1586 = vpop.xlane.xlu0 %1585
      %v1587 = vsel %vm1262, %v1541, 0.0
      %1588 = vadd.xlane.f32.xlu0 %v1587
      %v1589 = vpop.xlane.xlu0 %1588
      %v1590 = vld [vmem:[#allocation2] sm:$0x1]
      %v1592 = vlaneseq
      %v1593 = vshrl.u32 %v1592, 7
      %v1594 = vsub.s32 0, %v1593
      %v1595 = vrot.slane %v1590, %v1594
      %v1597 = vadd.f32 %v1544, %v1595
      %v1598 = vadd.f32 %v1547, %v1595
      %v1599 = vadd.f32 %v1550, %v1595
      %v1600 = vadd.f32 %v1553, %v1595
      %v1601 = vadd.f32 %v1556, %v1595
      %v1602 = vadd.f32 %v1559, %v1595
      %v1603 = vadd.f32 %v1562, %v1595
      %v1604 = vadd.f32 %v1565, %v1595
      %v1605 = vadd.f32 %v1568, %v1595
      %v1606 = vadd.f32 %v1571, %v1595
      %v1607 = vadd.f32 %v1574, %v1595
      %v1608 = vadd.f32 %v1577, %v1595
      %v1609 = vadd.f32 %v1580, %v1595
      %v1610 = vadd.f32 %v1583, %v1595
      %v1611 = vadd.f32 %v1586, %v1595
      %v1612 = vadd.f32 %v1589, %v1595
      %v1613 = vxor.u32 %v1597, 2147483648
      %v1614 = vxor.u32 %v1598, 2147483648
      %v1615 = vxor.u32 %v1599, 2147483648
      %v1616 = vxor.u32 %v1600, 2147483648
      %v1617 = vxor.u32 %v1601, 2147483648
      %v1618 = vxor.u32 %v1602, 2147483648
      %v1619 = vxor.u32 %v1603, 2147483648
      %v1620 = vxor.u32 %v1604, 2147483648
      %v1621 = vxor.u32 %v1605, 2147483648
      %v1622 = vxor.u32 %v1606, 2147483648
      %v1623 = vxor.u32 %v1607, 2147483648
      %v1624 = vxor.u32 %v1608, 2147483648
      %v1625 = vxor.u32 %v1609, 2147483648
      %v1626 = vxor.u32 %v1610, 2147483648
      %v1627 = vxor.u32 %v1611, 2147483648
      %v1628 = vxor.u32 %v1612, 2147483648
      %v1629 = vmul.f32 %v1613, 1.442695
      %v1630 = vpow.pop %v1629
      %v1631 = vmul.f32 %v1614, 1.442695
      %v1632 = vpow.pop %v1631
      %v1633 = vmul.f32 %v1615, 1.442695
      %v1634 = vpow.pop %v1633
      %v1635 = vmul.f32 %v1616, 1.442695
      %v1636 = vpow.pop %v1635
      %v1637 = vmul.f32 %v1617, 1.442695
      %v1638 = vpow.pop %v1637
      %v1639 = vmul.f32 %v1618, 1.442695
      %v1640 = vpow.pop %v1639
      %v1641 = vmul.f32 %v1619, 1.442695
      %v1642 = vpow.pop %v1641
      %v1643 = vmul.f32 %v1620, 1.442695
      %v1644 = vpow.pop %v1643
      %v1645 = vmul.f32 %v1621, 1.442695
      %v1646 = vpow.pop %v1645
      %v1647 = vmul.f32 %v1622, 1.442695
      %v1648 = vpow.pop %v1647
      %v1649 = vmul.f32 %v1623, 1.442695
      %v1650 = vpow.pop %v1649
      %v1651 = vmul.f32 %v1624, 1.442695
      %v1652 = vpow.pop %v1651
      %v1653 = vmul.f32 %v1625, 1.442695
      %v1654 = vpow.pop %v1653
      %v1655 = vmul.f32 %v1626, 1.442695
      %v1656 = vpow.pop %v1655
      %v1657 = vmul.f32 %v1627, 1.442695
      %v1658 = vpow.pop %v1657
      %v1659 = vmul.f32 %v1628, 1.442695
      %v1660 = vpow.pop %v1659
      %v1661 = vadd.f32 %v1630, 1.0
      %v1662 = vadd.f32 %v1632, 1.0
      %v1663 = vadd.f32 %v1634, 1.0
      %v1664 = vadd.f32 %v1636, 1.0
      %v1665 = vadd.f32 %v1638, 1.0
      %v1666 = vadd.f32 %v1640, 1.0
      %v1667 = vadd.f32 %v1642, 1.0
      %v1668 = vadd.f32 %v1644, 1.0
      %v1669 = vadd.f32 %v1646, 1.0
      %v1670 = vadd.f32 %v1648, 1.0
      %v1671 = vadd.f32 %v1650, 1.0
      %v1672 = vadd.f32 %v1652, 1.0
      %v1673 = vadd.f32 %v1654, 1.0
      %v1674 = vadd.f32 %v1656, 1.0
      %v1675 = vadd.f32 %v1658, 1.0
      %v1676 = vadd.f32 %v1660, 1.0
      %v1677 = vrcp.pop %v1661
      %v1678 = vmul.f32 1.0, %v1677
      %v1679 = vrcp.pop %v1662
      %v1680 = vmul.f32 1.0, %v1679
      %v1681 = vrcp.pop %v1663
      %v1682 = vmul.f32 1.0, %v1681
      %v1683 = vrcp.pop %v1664
      %v1684 = vmul.f32 1.0, %v1683
      %v1685 = vrcp.pop %v1665
      %v1686 = vmul.f32 1.0, %v1685
      %v1687 = vrcp.pop %v1666
      %v1688 = vmul.f32 1.0, %v1687
      %v1689 = vrcp.pop %v1667
      %v1690 = vmul.f32 1.0, %v1689
      %v1691 = vrcp.pop %v1668
      %v1692 = vmul.f32 1.0, %v1691
      %v1693 = vrcp.pop %v1669
      %v1694 = vmul.f32 1.0, %v1693
      %v1695 = vrcp.pop %v1670
      %v1696 = vmul.f32 1.0, %v1695
      %v1697 = vrcp.pop %v1671
      %v1698 = vmul.f32 1.0, %v1697
      %v1699 = vrcp.pop %v1672
      %v1700 = vmul.f32 1.0, %v1699
      %v1701 = vrcp.pop %v1673
      %v1702 = vmul.f32 1.0, %v1701
      %v1703 = vrcp.pop %v1674
      %v1704 = vmul.f32 1.0, %v1703
      %v1705 = vrcp.pop %v1675
      %v1706 = vmul.f32 1.0, %v1705
      %v1707 = vrcp.pop %v1676
      %v1708 = vmul.f32 1.0, %v1707
      %vm1709 = vcmask 7168
      %1710 = vst.msk [vmem:[%s488] sm:$0xff] %vm1709, %v1678
      %1711 = vst.msk [vmem:[%s488 + $0x8] sm:$0xff] %vm1709, %v1680
      %1712 = vst.msk [vmem:[%s488 + $0x10] sm:$0xff] %vm1709, %v1682
      %1713 = vst.msk [vmem:[%s488 + $0x18] sm:$0xff] %vm1709, %v1684
      %1714 = vst.msk [vmem:[%s488 + $0x20] sm:$0xff] %vm1709, %v1686
      %1715 = vst.msk [vmem:[%s488 + $0x28] sm:$0xff] %vm1709, %v1688
      %1716 = vst.msk [vmem:[%s488 + $0x30] sm:$0xff] %vm1709, %v1690
      %1717 = vst.msk [vmem:[%s488 + $0x38] sm:$0xff] %vm1709, %v1692
      %1718 = vst.msk [vmem:[%s488 + $0x40] sm:$0xff] %vm1709, %v1694
      %1719 = vst.msk [vmem:[%s488 + $0x48] sm:$0xff] %vm1709, %v1696
      %1720 = vst.msk [vmem:[%s488 + $0x50] sm:$0xff] %vm1709, %v1698
      %1721 = vst.msk [vmem:[%s488 + $0x58] sm:$0xff] %vm1709, %v1700
      %1722 = vst.msk [vmem:[%s488 + $0x60] sm:$0xff] %vm1709, %v1702
      %1723 = vst.msk [vmem:[%s488 + $0x68] sm:$0xff] %vm1709, %v1704
      %1724 = vst.msk [vmem:[%s488 + $0x70] sm:$0xff] %vm1709, %v1706
      %1725 = vst.msk [vmem:[%s488 + $0x78] sm:$0xff] %vm1709, %v1708
      %s1726 = smul.u32 16, %s26
      %p1727 = scmp.lt.s32.totalorder %s1726, 31
      %s1728 = scalar_select %p1727, %s1726, 31
      %s1729 = smul.addr %s1728, 8
      %s1730 = scalar_lea.vmem %s13, %s1729
      // Predicated region
      $region73: #{tpu_custom_call.1} parent=71 // pred_check
        %p1731 = pneg %p332
      $region74: #{tpu_custom_call.1} parent=71 // pred_check_branch
        %1733 = sbr.rel (%p1731) target = $region76
      $region75: #{tpu_custom_call.1} parent=71 // pred_region
        %s1734 = smul.u32 16, %s26
      $region76: #{tpu_custom_call.1} parent=71 // pred_fallthru
        _
    $region72: #{tpu_custom_call.1} parent=5 // pred_fallthru
      _
    %p1735 = scmp.le.s32.totalorder 2, %s21
    // Predicated region
    $region77: #{tpu_custom_call.1} parent=5 // pred_check
      %p1736 = pneg %p1735
    $region78: #{tpu_custom_call.1} parent=5 // pred_check_branch
      %1738 = sbr.rel (%p1736) target = $region80
    $region79: #{tpu_custom_call.1} parent=5 // pred_region
      %s1739 = ssub.s32 %s21, 2
      // Predicated region
      $region81: #{tpu_custom_call.1} parent=79 // pred_check
        %p1740 = pneg %p338
      $region82: #{tpu_custom_call.1} parent=79 // pred_check_branch
        %1742 = sbr.rel (%p1740) target = $region84
      $region83: #{tpu_custom_call.1} parent=79 // pred_region
        %s1743 = smul.u32 16, %s27
        %p1744 = scmp.lt.s32.totalorder %s1743, 31
        %s1745 = scalar_select %p1744, %s1743, 31
        %s1746 = smul.addr %s1745, 8
        %s1747 = scalar_lea.vmem %s13, %s1746
      $region84: #{tpu_custom_call.1} parent=79 // pred_fallthru
        _
    $region80: #{tpu_custom_call.1} parent=5 // pred_fallthru
      _
  $region6: #{tpu_custom_call.1} parent=0 // loop_footer
    %s25 = sadd.s32 1, %s21
  $region7: #{tpu_custom_call.1} parent=0 // loop_footer_branch
    %20 = sbr.rel target = $region3
  $region8: #{tpu_custom_call.1} parent=0 // loop_exit
    _

</llo_original>
